<compile_context>
chip_gen: v7x
topology: tpu7x:2x2x1
jax: 0.10.0
libtpu: 0.0.40
codegen_flags: <defaults>
</compile_context>

<pallas_src>
import jax
import jax.numpy as jnp
from jax import lax
from jax.experimental import pallas as pl
from jax.experimental.pallas import tpu as pltpu

NEG_SLOPE = 0.01   # torch.nn.LeakyReLU default
BN_EPS = 1e-5      # torch.nn.BatchNorm1d default


def _leaky(x):
    return jnp.where(x >= 0, x, NEG_SLOPE * x)


# ----------------------------------------------------------------------------
# Weight packing: every parameter goes into one (rows, 128) f32 slab -> 1 DMA.
# ----------------------------------------------------------------------------
class _Packer:
    """Packs small 2-D params into one (rows, 128) f32 slab; each param starts at an
    8-aligned row so in-kernel static ref slices stay tile-friendly."""

    def __init__(self):
        self._blocks = []
        self._row = 0

    def add(self, a):
        a = jnp.asarray(a, jnp.float32)
        assert a.ndim == 2 and a.shape[1] <= 128
        r, c = a.shape
        rp = -(-r // 8) * 8
        blk = jnp.zeros((rp, 128), jnp.float32).at[:r, :c].set(a)
        self._blocks.append(blk)
        off = (self._row, r, c)                 # (row offset, rows, cols) — Python ints
        self._row += rp
        return off

    def finish(self):
        return jnp.concatenate(self._blocks, axis=0)


def pack_backbone(layers, length):
    """Build the static per-layer plan and the packed weight slab."""
    pk = _Packer()
    plan = []
    L, Cout = length, None
    for kind, p, stride in layers:
        if stride != 1:
            # Residual (non-hoisted) stride: the flat (B*L, C) strided slice only keeps
            # per-batch rows aligned when L % stride == 0.
            assert L % stride == 0, "in-kernel stride requires L % stride == 0"
        if kind == "pw":
            plan.append(dict(kind="pw", stride=stride,
                             w=pk.add(p["w"]), b=pk.add(p["b"])))
            Cout = p["w"].shape[1]
        else:
            K = p["w1"].shape[1]
            # layer1 and downsample share the same LHS -> fuse into one weight.
            w1ds = jnp.concatenate([p["w1"], p["wds"]], axis=1)      # (Cin, K + Cout)
            b1ds = jnp.concatenate([p["b1"], p["bds"]], axis=1)      # (1,   K + Cout)
            plan.append(dict(kind="base", stride=stride, K=K,
                             w1ds=pk.add(w1ds), b1ds=pk.add(b1ds),
                             wdw=pk.add(p["wdw"]), bdw=pk.add(p["bdw"]),
                             w3=pk.add(p["w3"]), b3=pk.add(p["b3"]),
                             wsd=pk.add(p["wsd"]), bsd=pk.add(p["bsd"]),
                             wsu=pk.add(p["wsu"]), bsu=pk.add(p["bsu"])))
            Cout = p["w3"].shape[1]
        L = (L - 1) // stride + 1
    return plan, pk.finish(), (L, Cout)


# ----------------------------------------------------------------------------
# Single fused, grid-less kernel for the whole Backbone forward (whole batch).
# ----------------------------------------------------------------------------
def _make_kernel(plan, B, L_in):
    """plan / offsets are Python constants; the loop below is fully unrolled at trace time."""

    def getp(ref, off):
        r0, r, c = off
        return ref[r0:r0 + r, 0:c]             # static slice of the packed weight slab

    def kernel(x_ref, p_ref, o_ref):
        h = x_ref[...].astype(jnp.float32)      # (B*L, Cin)
        L = L_in
        for step in plan:
            stride = step["stride"]
            if stride != 1:
                # Not exercised in this config (strides are hoisted to the input);
                # kept for generality: static strided row slice, no MXU selection matmul.
                h = lax.slice(h, (0, 0), h.shape, (stride, 1))
                L = (L - 1) // stride + 1

            if step["kind"] == "pw":
                # 1x1 conv (+ folded BN) over the whole batch in one matmul.
                h = jnp.dot(h, getp(p_ref, step["w"]),
                            preferred_element_type=jnp.float32) + getp(p_ref, step["b"])
            else:
                K = step["K"]
                N = h.shape[0]                  # B * L
                # layer1 | downsample fused matmul, lane-sliced result.
                y = jnp.dot(h, getp(p_ref, step["w1ds"]),
                            preferred_element_type=jnp.float32) + getp(p_ref, step["b1ds"])
                t = _leaky(y[:, :K])            # layer1: conv + BN + LeakyReLU
                ds = y[:, K:]                   # downsample: conv + BN

                # Depthwise Conv1d(k=3, pad=1): XLU rolls + per-batch-segment boundary masks.
                wdw = getp(p_ref, step["wdw"])
                bdw = getp(p_ref, step["bdw"])
                pos = lax.broadcasted_iota(jnp.int32, t.shape, 0) % L
                t_prev = jnp.where(pos == 0, 0.0, pltpu.roll(t, 1, 0))        # t[l-1]
                t_next = jnp.where(pos == L - 1, 0.0, pltpu.roll(t, N - 1, 0))  # t[l+1]
                t = t_prev * wdw[0:1, :] + t * wdw[1:2, :] + t_next * wdw[2:3, :] + bdw

                # layer3: conv + BN + LeakyReLU
                t = _leaky(jnp.dot(t, getp(p_ref, step["w3"]),
                                   preferred_element_type=jnp.float32) + getp(p_ref, step["b3"]))

                # SE block, batched: per-batch global average pool -> (B, Cout) LHS so
                # both squeeze/excite matmuls run once for the whole batch.
                Cout = t.shape[1]
                pooled = jnp.concatenate(
                    [jnp.mean(t[b * L:(b + 1) * L, :], axis=0, keepdims=True)
                     for b in range(B)], axis=0)                               # (B, Cout)
                d = _leaky(jnp.dot(pooled, getp(p_ref, step["wsd"]),
                                   preferred_element_type=jnp.float32) + getp(p_ref, step["bsd"]))
                u = jnp.dot(d, getp(p_ref, step["wsu"]),
                            preferred_element_type=jnp.float32) + getp(p_ref, step["bsu"])
                coef = 1.0 / (1.0 + jnp.exp(-u))                               # exact sigmoid
                coef_rows = jnp.concatenate(
                    [jnp.broadcast_to(coef[b:b + 1, :], (L, Cout)) for b in range(B)], axis=0)
                h = t * coef_rows + ds                                         # SE gate + residual
        o_ref[...] = h.astype(o_ref.dtype)

    return kernel


def backbone_forward(x_blc, layers):
    """Whole backbone as one grid-less pallas_call.  x_blc: (B, L, Cin) -> (B, Lo, Cout)."""
    B, L, Cin = x_blc.shape

    # Hoist strides that are only preceded by pointwise layers onto the input
    # (a k=1 conv commutes with striding) -> free wrapper-side slice, no in-kernel work.
    input_stride = 1
    only_pw_so_far = True
    plan_layers = []
    for kind, p, stride in layers:
        if stride != 1 and only_pw_so_far:
            input_stride *= stride
            stride = 1
        if kind != "pw":
            only_pw_so_far = False
        plan_layers.append((kind, p, stride))

    if input_stride != 1:
        x_blc = x_blc[:, ::input_stride, :]
    L = x_blc.shape[1]

    plan, params, (Lo, Cout) = pack_backbone(plan_layers, L)
    x_flat = x_blc.reshape(B * L, Cin)

    kernel = _make_kernel(plan, B, L)
    out_flat = pl.pallas_call(
        kernel,
        out_shape=jax.ShapeDtypeStruct((B * Lo, Cout), x_blc.dtype),
        in_specs=[pl.BlockSpec(memory_space=pltpu.MemorySpace.VMEM),   # x        (1 DMA)
                  pl.BlockSpec(memory_space=pltpu.MemorySpace.VMEM)],  # all weights (1 DMA)
        out_specs=pl.BlockSpec(memory_space=pltpu.MemorySpace.VMEM),
    )(x_flat, params)
    return out_flat.reshape(B, Lo, Cout)


# ----------------------------------------------------------------------------
# Deterministic parameter construction mirroring Backbone.__init__
# ----------------------------------------------------------------------------
class ParamGen:
    def __init__(self, seed=42):
        self._key = jax.random.PRNGKey(seed)

    def normal(self, shape, scale=0.1):
        self._key, sub = jax.random.split(self._key)
        return scale * jax.random.normal(sub, shape, dtype=jnp.float32)


def fold_conv_bn(w, b, gamma, beta, rm, rv, eps=BN_EPS):
    scale = gamma / jnp.sqrt(rv + eps)
    w_eff = w * scale[None, :]
    b_eff = (b - rm) * scale + beta
    return w_eff, b_eff.reshape(1, -1)


def make_conv_bn(pg, cin, cout):
    w = pg.normal((cin, cout))
    b = pg.normal((cout,))
    gamma = 1.0 + pg.normal((cout,))
    beta = pg.normal((cout,))
    rm = jnp.zeros((cout,), jnp.float32)
    rv = jnp.ones((cout,), jnp.float32)
    return fold_conv_bn(w, b, gamma, beta, rm, rv)


def make_conv(pg, cin, cout):
    return pg.normal((cin, cout)), pg.normal((cout,)).reshape(1, -1)


def make_backbone_base_params(pg, in_chan, out_chan, multiplier, k):
    K = int(k * in_chan)
    out_dim = int(out_chan * multiplier)
    w1, b1 = make_conv_bn(pg, in_chan, K)
    wdw = pg.normal((3, K))                       # depthwise: wdw[tap, ch]
    bdw = pg.normal((K,)).reshape(1, -1)
    w3, b3 = make_conv_bn(pg, K, out_dim)
    wsd, bsd = make_conv(pg, out_dim, out_dim // 2)
    wsu, bsu = make_conv(pg, out_dim // 2, out_dim)
    wds, bds = make_conv_bn(pg, in_chan, out_dim)
    return dict(w1=w1, b1=b1, wdw=wdw, bdw=bdw, w3=w3, b3=b3,
                wsd=wsd, bsd=bsd, wsu=wsu, bsu=bsu, wds=wds, bds=bds)


def build_backbone(pg, in_chan, c, n, s, multiplier=1):
    layers = []
    w, b = make_conv_bn(pg, in_chan, int(multiplier * c[0]))   # BN(c[1]) requires c[0]==c[1]
    layers.append(("pw", dict(w=w, b=b), s[0]))
    for i in range(1, len(s) - 1):
        inc, outc, stride = int(multiplier * c[i - 1]), c[i], s[i]
        for _ in range(n[i]):
            layers.append(("base",
                           make_backbone_base_params(pg, inc, outc, multiplier, 6),
                           stride))
            inc, stride = outc, 1
    w, b = make_conv_bn(pg, int(multiplier * c[-2]), int(multiplier * c[-1]))
    layers.append(("pw", dict(w=w, b=b), s[-1]))
    return layers


if __name__ == "__main__":
    # Backbone(in_chan=4, c=[8,8,16,16], n=[1,1,1,1], s=[1,2,1,1], multiplier=1)
    in_chan = 4
    c = [8, 8, 16, 16]
    n = [1, 1, 1, 1]
    s = [1, 2, 1, 1]
    B, L = 2, 16

    pg = ParamGen(seed=42)
    layers = build_backbone(pg, in_chan, c, n, s, multiplier=1)

    # PyTorch-style input (B, C, L); kernel layout is (B, L, C).
    x_bcl = jax.random.normal(jax.random.PRNGKey(0), (B, in_chan, L), dtype=jnp.float32)
    x_blc = jnp.transpose(x_bcl, (0, 2, 1))

    y_blc = backbone_forward(x_blc, layers)
    y_bcl = jnp.transpose(y_blc, (0, 2, 1))        # back to (B, C, L), here (2, 16, 8)
    jax.block_until_ready(y_bcl)
    assert y_bcl.shape == (B, int(c[-1]), L // s[1])
    print("KERNEL_OK")
</pallas_src>

<mosaic_0001>
module attributes {stable_mosaic.version = 11 : i64} {
  func.func @kernel(%arg0: memref<16x4xf32, #tpu.memory_space<vmem>>, %arg1: memref<288x128xf32, #tpu.memory_space<vmem>>, %arg2: memref<16x16xf32, #tpu.memory_space<vmem>>) attributes {dimension_semantics = [], scalar_prefetch = 0 : i64, scratch_operands = 0 : i64, tpu.core_type = #tpu.core_type<tc>} {
    %c0 = arith.constant 0 : index
    %c0_0 = arith.constant 0 : index
    %0 = vector.load %arg0[%c0, %c0_0] : memref<16x4xf32, #tpu.memory_space<vmem>>, vector<16x4xf32>
    %c0_1 = arith.constant 0 : index
    %c0_2 = arith.constant 0 : index
    %1 = vector.load %arg1[%c0_1, %c0_2] : memref<288x128xf32, #tpu.memory_space<vmem>>, vector<4x8xf32>
    %cst = arith.constant dense<0.000000e+00> : vector<16x8xf32>
    %2 = tpu.matmul %0, %1, %cst {dimension_numbers = #tpu.dot_dimension_numbers<[1], [0], [0], [1], [0, 0, 1, 1], [], []>} : vector<16x4xf32>, vector<4x8xf32>, vector<16x8xf32> -> vector<16x8xf32>
    %c8 = arith.constant 8 : index
    %c0_3 = arith.constant 0 : index
    %3 = vector.load %arg1[%c8, %c0_3] : memref<288x128xf32, #tpu.memory_space<vmem>>, vector<1x8xf32>
    %4 = vector.broadcast %3 : vector<1x8xf32> to vector<16x8xf32>
    %5 = arith.addf %2, %4 : vector<16x8xf32>
    %c16 = arith.constant 16 : index
    %c0_4 = arith.constant 0 : index
    %6 = vector.load %arg1[%c16, %c0_4] : memref<288x128xf32, #tpu.memory_space<vmem>>, vector<8x56xf32>
    %cst_5 = arith.constant dense<0.000000e+00> : vector<16x56xf32>
    %7 = tpu.matmul %5, %6, %cst_5 {dimension_numbers = #tpu.dot_dimension_numbers<[1], [0], [0], [1], [0, 0, 1, 1], [], []>} : vector<16x8xf32>, vector<8x56xf32>, vector<16x56xf32> -> vector<16x56xf32>
    %c24 = arith.constant 24 : index
    %c0_6 = arith.constant 0 : index
    %8 = vector.load %arg1[%c24, %c0_6] : memref<288x128xf32, #tpu.memory_space<vmem>>, vector<1x56xf32>
    %9 = vector.broadcast %8 : vector<1x56xf32> to vector<16x56xf32>
    %10 = arith.addf %7, %9 : vector<16x56xf32>
    %11 = vector.extract_strided_slice %10 {offsets = [0, 0], sizes = [16, 48], strides = [1, 1]} : vector<16x56xf32> to vector<16x48xf32>
    %cst_7 = arith.constant 0.000000e+00 : f32
    %12 = vector.broadcast %cst_7 : f32 to vector<16x48xf32>
    %13 = arith.cmpf oge, %11, %12 : vector<16x48xf32>
    %cst_8 = arith.constant 0.00999999977 : f32
    %14 = vector.broadcast %cst_8 : f32 to vector<16x48xf32>
    %15 = arith.mulf %14, %11 : vector<16x48xf32>
    %16 = arith.select %13, %11, %15 : vector<16x48xi1>, vector<16x48xf32>
    %17 = vector.extract_strided_slice %10 {offsets = [0, 48], sizes = [16, 8], strides = [1, 1]} : vector<16x56xf32> to vector<16x8xf32>
    %c32 = arith.constant 32 : index
    %c0_9 = arith.constant 0 : index
    %18 = vector.load %arg1[%c32, %c0_9] : memref<288x128xf32, #tpu.memory_space<vmem>>, vector<3x48xf32>
    %c40 = arith.constant 40 : index
    %c0_10 = arith.constant 0 : index
    %19 = vector.load %arg1[%c40, %c0_10] : memref<288x128xf32, #tpu.memory_space<vmem>>, vector<1x48xf32>
    %20 = tpu.iota {dimensions = array<i32: 0>} : vector<16x48xi32>
    %c8_i32 = arith.constant 8 : i32
    %c0_i32 = arith.constant 0 : i32
    %21 = arith.cmpi eq, %c8_i32, %c0_i32 : i32
    %c1_i32 = arith.constant 1 : i32
    %22 = arith.select %21, %c1_i32, %c8_i32 : i32
    %23 = vector.broadcast %22 : i32 to vector<16x48xi32>
    %24 = arith.remsi %20, %23 : vector<16x48xi32>
    %c0_i32_11 = arith.constant 0 : i32
    %25 = vector.broadcast %c0_i32_11 : i32 to vector<16x48xi32>
    %26 = arith.cmpi ne, %24, %25 : vector<16x48xi32>
    %c0_i32_12 = arith.constant 0 : i32
    %27 = vector.broadcast %c0_i32_12 : i32 to vector<16x48xi32>
    %28 = arith.cmpi slt, %24, %27 : vector<16x48xi32>
    %c0_i32_13 = arith.constant 0 : i32
    %29 = arith.cmpi slt, %22, %c0_i32_13 : i32
    %30 = vector.broadcast %29 : i1 to vector<16x48xi1>
    %31 = vector.broadcast %30 : vector<16x48xi1> to vector<16x48xi1>
    %32 = arith.xori %28, %31 : vector<16x48xi1>
    %33 = arith.andi %32, %26 : vector<16x48xi1>
    %34 = vector.broadcast %22 : i32 to vector<16x48xi32>
    %35 = arith.addi %24, %34 : vector<16x48xi32>
    %36 = arith.select %33, %35, %24 : vector<16x48xi1>, vector<16x48xi32>
    %c0_i32_14 = arith.constant 0 : i32
    %37 = vector.broadcast %c0_i32_14 : i32 to vector<16x48xi32>
    %38 = arith.cmpi eq, %36, %37 : vector<16x48xi32>
    %c1_i32_15 = arith.constant 1 : i32
    %39 = tpu.dynamic_rotate %16 by %c1_i32_15 dim 0 : vector<16x48xf32>, i32 -> vector<16x48xf32>
    %cst_16 = arith.constant 0.000000e+00 : f32
    %40 = vector.broadcast %cst_16 : f32 to vector<16x48xf32>
    %41 = arith.select %38, %40, %39 : vector<16x48xi1>, vector<16x48xf32>
    %c7_i32 = arith.constant 7 : i32
    %42 = vector.broadcast %c7_i32 : i32 to vector<16x48xi32>
    %43 = arith.cmpi eq, %36, %42 : vector<16x48xi32>
    %c15_i32 = arith.constant 15 : i32
    %44 = tpu.dynamic_rotate %16 by %c15_i32 dim 0 : vector<16x48xf32>, i32 -> vector<16x48xf32>
    %cst_17 = arith.constant 0.000000e+00 : f32
    %45 = vector.broadcast %cst_17 : f32 to vector<16x48xf32>
    %46 = arith.select %43, %45, %44 : vector<16x48xi1>, vector<16x48xf32>
    %47 = vector.extract_strided_slice %18 {offsets = [0, 0], sizes = [1, 48], strides = [1, 1]} : vector<3x48xf32> to vector<1x48xf32>
    %48 = vector.broadcast %47 : vector<1x48xf32> to vector<16x48xf32>
    %49 = arith.mulf %41, %48 : vector<16x48xf32>
    %50 = vector.extract_strided_slice %18 {offsets = [1, 0], sizes = [1, 48], strides = [1, 1]} : vector<3x48xf32> to vector<1x48xf32>
    %51 = vector.broadcast %50 : vector<1x48xf32> to vector<16x48xf32>
    %52 = arith.mulf %16, %51 : vector<16x48xf32>
    %53 = arith.addf %49, %52 : vector<16x48xf32>
    %54 = vector.extract_strided_slice %18 {offsets = [2, 0], sizes = [1, 48], strides = [1, 1]} : vector<3x48xf32> to vector<1x48xf32>
    %55 = vector.broadcast %54 : vector<1x48xf32> to vector<16x48xf32>
    %56 = arith.mulf %46, %55 : vector<16x48xf32>
    %57 = arith.addf %53, %56 : vector<16x48xf32>
    %58 = vector.broadcast %19 : vector<1x48xf32> to vector<16x48xf32>
    %59 = arith.addf %57, %58 : vector<16x48xf32>
    %c48 = arith.constant 48 : index
    %c0_18 = arith.constant 0 : index
    %60 = vector.load %arg1[%c48, %c0_18] : memref<288x128xf32, #tpu.memory_space<vmem>>, vector<48x8xf32>
    %cst_19 = arith.constant dense<0.000000e+00> : vector<16x8xf32>
    %61 = tpu.matmul %59, %60, %cst_19 {dimension_numbers = #tpu.dot_dimension_numbers<[1], [0], [0], [1], [0, 0, 1, 1], [], []>} : vector<16x48xf32>, vector<48x8xf32>, vector<16x8xf32> -> vector<16x8xf32>
    %c96 = arith.constant 96 : index
    %c0_20 = arith.constant 0 : index
    %62 = vector.load %arg1[%c96, %c0_20] : memref<288x128xf32, #tpu.memory_space<vmem>>, vector<1x8xf32>
    %63 = vector.broadcast %62 : vector<1x8xf32> to vector<16x8xf32>
    %64 = arith.addf %61, %63 : vector<16x8xf32>
    %cst_21 = arith.constant 0.000000e+00 : f32
    %65 = vector.broadcast %cst_21 : f32 to vector<16x8xf32>
    %66 = arith.cmpf oge, %64, %65 : vector<16x8xf32>
    %cst_22 = arith.constant 0.00999999977 : f32
    %67 = vector.broadcast %cst_22 : f32 to vector<16x8xf32>
    %68 = arith.mulf %67, %64 : vector<16x8xf32>
    %69 = arith.select %66, %64, %68 : vector<16x8xi1>, vector<16x8xf32>
    %70 = vector.extract_strided_slice %69 {offsets = [0, 0], sizes = [8, 8], strides = [1, 1]} : vector<16x8xf32> to vector<8x8xf32>
    %cst_23 = arith.constant dense<0.000000e+00> : vector<8xf32>
    %71 = vector.multi_reduction <add>, %70, %cst_23 [0] : vector<8x8xf32> to vector<8xf32>
    %72 = vector.shape_cast %71 : vector<8xf32> to vector<1x8xf32>
    %cst_24 = arith.constant 8.000000e+00 : f32
    %73 = vector.broadcast %cst_24 : f32 to vector<1x8xf32>
    %74 = arith.divf %72, %73 : vector<1x8xf32>
    %75 = vector.extract_strided_slice %69 {offsets = [8, 0], sizes = [8, 8], strides = [1, 1]} : vector<16x8xf32> to vector<8x8xf32>
    %cst_25 = arith.constant dense<0.000000e+00> : vector<8xf32>
    %76 = vector.multi_reduction <add>, %75, %cst_25 [0] : vector<8x8xf32> to vector<8xf32>
    %77 = vector.shape_cast %76 : vector<8xf32> to vector<1x8xf32>
    %cst_26 = arith.constant 8.000000e+00 : f32
    %78 = vector.broadcast %cst_26 : f32 to vector<1x8xf32>
    %79 = arith.divf %77, %78 : vector<1x8xf32>
    %80 = tpu.concatenate %74, %79 in 0 : vector<1x8xf32>, vector<1x8xf32> -> vector<2x8xf32>
    %c104 = arith.constant 104 : index
    %c0_27 = arith.constant 0 : index
    %81 = vector.load %arg1[%c104, %c0_27] : memref<288x128xf32, #tpu.memory_space<vmem>>, vector<8x4xf32>
    %cst_28 = arith.constant dense<0.000000e+00> : vector<2x4xf32>
    %82 = tpu.matmul %80, %81, %cst_28 {dimension_numbers = #tpu.dot_dimension_numbers<[1], [0], [0], [1], [0, 0, 1, 1], [], []>} : vector<2x8xf32>, vector<8x4xf32>, vector<2x4xf32> -> vector<2x4xf32>
    %c112 = arith.constant 112 : index
    %c0_29 = arith.constant 0 : index
    %83 = vector.load %arg1[%c112, %c0_29] : memref<288x128xf32, #tpu.memory_space<vmem>>, vector<1x4xf32>
    %84 = vector.broadcast %83 : vector<1x4xf32> to vector<2x4xf32>
    %85 = arith.addf %82, %84 : vector<2x4xf32>
    %cst_30 = arith.constant 0.000000e+00 : f32
    %86 = vector.broadcast %cst_30 : f32 to vector<2x4xf32>
    %87 = arith.cmpf oge, %85, %86 : vector<2x4xf32>
    %cst_31 = arith.constant 0.00999999977 : f32
    %88 = vector.broadcast %cst_31 : f32 to vector<2x4xf32>
    %89 = arith.mulf %88, %85 : vector<2x4xf32>
    %90 = arith.select %87, %85, %89 : vector<2x4xi1>, vector<2x4xf32>
    %c120 = arith.constant 120 : index
    %c0_32 = arith.constant 0 : index
    %91 = vector.load %arg1[%c120, %c0_32] : memref<288x128xf32, #tpu.memory_space<vmem>>, vector<4x8xf32>
    %cst_33 = arith.constant dense<0.000000e+00> : vector<2x8xf32>
    %92 = tpu.matmul %90, %91, %cst_33 {dimension_numbers = #tpu.dot_dimension_numbers<[1], [0], [0], [1], [0, 0, 1, 1], [], []>} : vector<2x4xf32>, vector<4x8xf32>, vector<2x8xf32> -> vector<2x8xf32>
    %c128 = arith.constant 128 : index
    %c0_34 = arith.constant 0 : index
    %93 = vector.load %arg1[%c128, %c0_34] : memref<288x128xf32, #tpu.memory_space<vmem>>, vector<1x8xf32>
    %94 = vector.broadcast %93 : vector<1x8xf32> to vector<2x8xf32>
    %95 = arith.addf %92, %94 : vector<2x8xf32>
    %cst_35 = arith.constant 0.000000e+00 : f32
    %96 = vector.broadcast %cst_35 : f32 to vector<2x8xf32>
    %97 = arith.subf %96, %95 : vector<2x8xf32>
    %98 = math.exp %97 : vector<2x8xf32>
    %cst_36 = arith.constant 1.000000e+00 : f32
    %99 = vector.broadcast %cst_36 : f32 to vector<2x8xf32>
    %100 = arith.addf %99, %98 : vector<2x8xf32>
    %cst_37 = arith.constant 1.000000e+00 : f32
    %101 = vector.broadcast %cst_37 : f32 to vector<2x8xf32>
    %102 = arith.divf %101, %100 : vector<2x8xf32>
    %103 = vector.extract_strided_slice %102 {offsets = [0, 0], sizes = [1, 8], strides = [1, 1]} : vector<2x8xf32> to vector<1x8xf32>
    %104 = vector.shape_cast %103 : vector<1x8xf32> to vector<1x8xf32>
    %105 = vector.broadcast %104 : vector<1x8xf32> to vector<8x8xf32>
    %106 = vector.extract_strided_slice %102 {offsets = [1, 0], sizes = [1, 8], strides = [1, 1]} : vector<2x8xf32> to vector<1x8xf32>
    %107 = vector.shape_cast %106 : vector<1x8xf32> to vector<1x8xf32>
    %108 = vector.broadcast %107 : vector<1x8xf32> to vector<8x8xf32>
    %109 = tpu.concatenate %105, %108 in 0 : vector<8x8xf32>, vector<8x8xf32> -> vector<16x8xf32>
    %110 = arith.mulf %69, %109 : vector<16x8xf32>
    %111 = arith.addf %110, %17 : vector<16x8xf32>
    %c136 = arith.constant 136 : index
    %c0_38 = arith.constant 0 : index
    %112 = vector.load %arg1[%c136, %c0_38] : memref<288x128xf32, #tpu.memory_space<vmem>>, vector<8x64xf32>
    %cst_39 = arith.constant dense<0.000000e+00> : vector<16x64xf32>
    %113 = tpu.matmul %111, %112, %cst_39 {dimension_numbers = #tpu.dot_dimension_numbers<[1], [0], [0], [1], [0, 0, 1, 1], [], []>} : vector<16x8xf32>, vector<8x64xf32>, vector<16x64xf32> -> vector<16x64xf32>
    %c144 = arith.constant 144 : index
    %c0_40 = arith.constant 0 : index
    %114 = vector.load %arg1[%c144, %c0_40] : memref<288x128xf32, #tpu.memory_space<vmem>>, vector<1x64xf32>
    %115 = vector.broadcast %114 : vector<1x64xf32> to vector<16x64xf32>
    %116 = arith.addf %113, %115 : vector<16x64xf32>
    %117 = vector.extract_strided_slice %116 {offsets = [0, 0], sizes = [16, 48], strides = [1, 1]} : vector<16x64xf32> to vector<16x48xf32>
    %cst_41 = arith.constant 0.000000e+00 : f32
    %118 = vector.broadcast %cst_41 : f32 to vector<16x48xf32>
    %119 = arith.cmpf oge, %117, %118 : vector<16x48xf32>
    %cst_42 = arith.constant 0.00999999977 : f32
    %120 = vector.broadcast %cst_42 : f32 to vector<16x48xf32>
    %121 = arith.mulf %120, %117 : vector<16x48xf32>
    %122 = arith.select %119, %117, %121 : vector<16x48xi1>, vector<16x48xf32>
    %123 = vector.extract_strided_slice %116 {offsets = [0, 48], sizes = [16, 16], strides = [1, 1]} : vector<16x64xf32> to vector<16x16xf32>
    %c152 = arith.constant 152 : index
    %c0_43 = arith.constant 0 : index
    %124 = vector.load %arg1[%c152, %c0_43] : memref<288x128xf32, #tpu.memory_space<vmem>>, vector<3x48xf32>
    %c160 = arith.constant 160 : index
    %c0_44 = arith.constant 0 : index
    %125 = vector.load %arg1[%c160, %c0_44] : memref<288x128xf32, #tpu.memory_space<vmem>>, vector<1x48xf32>
    %126 = tpu.iota {dimensions = array<i32: 0>} : vector<16x48xi32>
    %c8_i32_45 = arith.constant 8 : i32
    %c0_i32_46 = arith.constant 0 : i32
    %127 = arith.cmpi eq, %c8_i32_45, %c0_i32_46 : i32
    %c1_i32_47 = arith.constant 1 : i32
    %128 = arith.select %127, %c1_i32_47, %c8_i32_45 : i32
    %129 = vector.broadcast %128 : i32 to vector<16x48xi32>
    %130 = arith.remsi %126, %129 : vector<16x48xi32>
    %c0_i32_48 = arith.constant 0 : i32
    %131 = vector.broadcast %c0_i32_48 : i32 to vector<16x48xi32>
    %132 = arith.cmpi ne, %130, %131 : vector<16x48xi32>
    %c0_i32_49 = arith.constant 0 : i32
    %133 = vector.broadcast %c0_i32_49 : i32 to vector<16x48xi32>
    %134 = arith.cmpi slt, %130, %133 : vector<16x48xi32>
    %c0_i32_50 = arith.constant 0 : i32
    %135 = arith.cmpi slt, %128, %c0_i32_50 : i32
    %136 = vector.broadcast %135 : i1 to vector<16x48xi1>
    %137 = vector.broadcast %136 : vector<16x48xi1> to vector<16x48xi1>
    %138 = arith.xori %134, %137 : vector<16x48xi1>
    %139 = arith.andi %138, %132 : vector<16x48xi1>
    %140 = vector.broadcast %128 : i32 to vector<16x48xi32>
    %141 = arith.addi %130, %140 : vector<16x48xi32>
    %142 = arith.select %139, %141, %130 : vector<16x48xi1>, vector<16x48xi32>
    %c0_i32_51 = arith.constant 0 : i32
    %143 = vector.broadcast %c0_i32_51 : i32 to vector<16x48xi32>
    %144 = arith.cmpi eq, %142, %143 : vector<16x48xi32>
    %c1_i32_52 = arith.constant 1 : i32
    %145 = tpu.dynamic_rotate %122 by %c1_i32_52 dim 0 : vector<16x48xf32>, i32 -> vector<16x48xf32>
    %cst_53 = arith.constant 0.000000e+00 : f32
    %146 = vector.broadcast %cst_53 : f32 to vector<16x48xf32>
    %147 = arith.select %144, %146, %145 : vector<16x48xi1>, vector<16x48xf32>
    %c7_i32_54 = arith.constant 7 : i32
    %148 = vector.broadcast %c7_i32_54 : i32 to vector<16x48xi32>
    %149 = arith.cmpi eq, %142, %148 : vector<16x48xi32>
    %c15_i32_55 = arith.constant 15 : i32
    %150 = tpu.dynamic_rotate %122 by %c15_i32_55 dim 0 : vector<16x48xf32>, i32 -> vector<16x48xf32>
    %cst_56 = arith.constant 0.000000e+00 : f32
    %151 = vector.broadcast %cst_56 : f32 to vector<16x48xf32>
    %152 = arith.select %149, %151, %150 : vector<16x48xi1>, vector<16x48xf32>
    %153 = vector.extract_strided_slice %124 {offsets = [0, 0], sizes = [1, 48], strides = [1, 1]} : vector<3x48xf32> to vector<1x48xf32>
    %154 = vector.broadcast %153 : vector<1x48xf32> to vector<16x48xf32>
    %155 = arith.mulf %147, %154 : vector<16x48xf32>
    %156 = vector.extract_strided_slice %124 {offsets = [1, 0], sizes = [1, 48], strides = [1, 1]} : vector<3x48xf32> to vector<1x48xf32>
    %157 = vector.broadcast %156 : vector<1x48xf32> to vector<16x48xf32>
    %158 = arith.mulf %122, %157 : vector<16x48xf32>
    %159 = arith.addf %155, %158 : vector<16x48xf32>
    %160 = vector.extract_strided_slice %124 {offsets = [2, 0], sizes = [1, 48], strides = [1, 1]} : vector<3x48xf32> to vector<1x48xf32>
    %161 = vector.broadcast %160 : vector<1x48xf32> to vector<16x48xf32>
    %162 = arith.mulf %152, %161 : vector<16x48xf32>
    %163 = arith.addf %159, %162 : vector<16x48xf32>
    %164 = vector.broadcast %125 : vector<1x48xf32> to vector<16x48xf32>
    %165 = arith.addf %163, %164 : vector<16x48xf32>
    %c168 = arith.constant 168 : index
    %c0_57 = arith.constant 0 : index
    %166 = vector.load %arg1[%c168, %c0_57] : memref<288x128xf32, #tpu.memory_space<vmem>>, vector<48x16xf32>
    %cst_58 = arith.constant dense<0.000000e+00> : vector<16x16xf32>
    %167 = tpu.matmul %165, %166, %cst_58 {dimension_numbers = #tpu.dot_dimension_numbers<[1], [0], [0], [1], [0, 0, 1, 1], [], []>} : vector<16x48xf32>, vector<48x16xf32>, vector<16x16xf32> -> vector<16x16xf32>
    %c216 = arith.constant 216 : index
    %c0_59 = arith.constant 0 : index
    %168 = vector.load %arg1[%c216, %c0_59] : memref<288x128xf32, #tpu.memory_space<vmem>>, vector<1x16xf32>
    %169 = vector.broadcast %168 : vector<1x16xf32> to vector<16x16xf32>
    %170 = arith.addf %167, %169 : vector<16x16xf32>
    %cst_60 = arith.constant 0.000000e+00 : f32
    %171 = vector.broadcast %cst_60 : f32 to vector<16x16xf32>
    %172 = arith.cmpf oge, %170, %171 : vector<16x16xf32>
    %cst_61 = arith.constant 0.00999999977 : f32
    %173 = vector.broadcast %cst_61 : f32 to vector<16x16xf32>
    %174 = arith.mulf %173, %170 : vector<16x16xf32>
    %175 = arith.select %172, %170, %174 : vector<16x16xi1>, vector<16x16xf32>
    %176 = vector.extract_strided_slice %175 {offsets = [0, 0], sizes = [8, 16], strides = [1, 1]} : vector<16x16xf32> to vector<8x16xf32>
    %cst_62 = arith.constant dense<0.000000e+00> : vector<16xf32>
    %177 = vector.multi_reduction <add>, %176, %cst_62 [0] : vector<8x16xf32> to vector<16xf32>
    %178 = vector.shape_cast %177 : vector<16xf32> to vector<1x16xf32>
    %cst_63 = arith.constant 8.000000e+00 : f32
    %179 = vector.broadcast %cst_63 : f32 to vector<1x16xf32>
    %180 = arith.divf %178, %179 : vector<1x16xf32>
    %181 = vector.extract_strided_slice %175 {offsets = [8, 0], sizes = [8, 16], strides = [1, 1]} : vector<16x16xf32> to vector<8x16xf32>
    %cst_64 = arith.constant dense<0.000000e+00> : vector<16xf32>
    %182 = vector.multi_reduction <add>, %181, %cst_64 [0] : vector<8x16xf32> to vector<16xf32>
    %183 = vector.shape_cast %182 : vector<16xf32> to vector<1x16xf32>
    %cst_65 = arith.constant 8.000000e+00 : f32
    %184 = vector.broadcast %cst_65 : f32 to vector<1x16xf32>
    %185 = arith.divf %183, %184 : vector<1x16xf32>
    %186 = tpu.concatenate %180, %185 in 0 : vector<1x16xf32>, vector<1x16xf32> -> vector<2x16xf32>
    %c224 = arith.constant 224 : index
    %c0_66 = arith.constant 0 : index
    %187 = vector.load %arg1[%c224, %c0_66] : memref<288x128xf32, #tpu.memory_space<vmem>>, vector<16x8xf32>
    %cst_67 = arith.constant dense<0.000000e+00> : vector<2x8xf32>
    %188 = tpu.matmul %186, %187, %cst_67 {dimension_numbers = #tpu.dot_dimension_numbers<[1], [0], [0], [1], [0, 0, 1, 1], [], []>} : vector<2x16xf32>, vector<16x8xf32>, vector<2x8xf32> -> vector<2x8xf32>
    %c240 = arith.constant 240 : index
    %c0_68 = arith.constant 0 : index
    %189 = vector.load %arg1[%c240, %c0_68] : memref<288x128xf32, #tpu.memory_space<vmem>>, vector<1x8xf32>
    %190 = vector.broadcast %189 : vector<1x8xf32> to vector<2x8xf32>
    %191 = arith.addf %188, %190 : vector<2x8xf32>
    %cst_69 = arith.constant 0.000000e+00 : f32
    %192 = vector.broadcast %cst_69 : f32 to vector<2x8xf32>
    %193 = arith.cmpf oge, %191, %192 : vector<2x8xf32>
    %cst_70 = arith.constant 0.00999999977 : f32
    %194 = vector.broadcast %cst_70 : f32 to vector<2x8xf32>
    %195 = arith.mulf %194, %191 : vector<2x8xf32>
    %196 = arith.select %193, %191, %195 : vector<2x8xi1>, vector<2x8xf32>
    %c248 = arith.constant 248 : index
    %c0_71 = arith.constant 0 : index
    %197 = vector.load %arg1[%c248, %c0_71] : memref<288x128xf32, #tpu.memory_space<vmem>>, vector<8x16xf32>
    %cst_72 = arith.constant dense<0.000000e+00> : vector<2x16xf32>
    %198 = tpu.matmul %196, %197, %cst_72 {dimension_numbers = #tpu.dot_dimension_numbers<[1], [0], [0], [1], [0, 0, 1, 1], [], []>} : vector<2x8xf32>, vector<8x16xf32>, vector<2x16xf32> -> vector<2x16xf32>
    %c256 = arith.constant 256 : index
    %c0_73 = arith.constant 0 : index
    %199 = vector.load %arg1[%c256, %c0_73] : memref<288x128xf32, #tpu.memory_space<vmem>>, vector<1x16xf32>
    %200 = vector.broadcast %199 : vector<1x16xf32> to vector<2x16xf32>
    %201 = arith.addf %198, %200 : vector<2x16xf32>
    %cst_74 = arith.constant 0.000000e+00 : f32
    %202 = vector.broadcast %cst_74 : f32 to vector<2x16xf32>
    %203 = arith.subf %202, %201 : vector<2x16xf32>
    %204 = math.exp %203 : vector<2x16xf32>
    %cst_75 = arith.constant 1.000000e+00 : f32
    %205 = vector.broadcast %cst_75 : f32 to vector<2x16xf32>
    %206 = arith.addf %205, %204 : vector<2x16xf32>
    %cst_76 = arith.constant 1.000000e+00 : f32
    %207 = vector.broadcast %cst_76 : f32 to vector<2x16xf32>
    %208 = arith.divf %207, %206 : vector<2x16xf32>
    %209 = vector.extract_strided_slice %208 {offsets = [0, 0], sizes = [1, 16], strides = [1, 1]} : vector<2x16xf32> to vector<1x16xf32>
    %210 = vector.shape_cast %209 : vector<1x16xf32> to vector<1x16xf32>
    %211 = vector.broadcast %210 : vector<1x16xf32> to vector<8x16xf32>
    %212 = vector.extract_strided_slice %208 {offsets = [1, 0], sizes = [1, 16], strides = [1, 1]} : vector<2x16xf32> to vector<1x16xf32>
    %213 = vector.shape_cast %212 : vector<1x16xf32> to vector<1x16xf32>
    %214 = vector.broadcast %213 : vector<1x16xf32> to vector<8x16xf32>
    %215 = tpu.concatenate %211, %214 in 0 : vector<8x16xf32>, vector<8x16xf32> -> vector<16x16xf32>
    %216 = arith.mulf %175, %215 : vector<16x16xf32>
    %217 = arith.addf %216, %123 : vector<16x16xf32>
    %c264 = arith.constant 264 : index
    %c0_77 = arith.constant 0 : index
    %218 = vector.load %arg1[%c264, %c0_77] : memref<288x128xf32, #tpu.memory_space<vmem>>, vector<16x16xf32>
    %cst_78 = arith.constant dense<0.000000e+00> : vector<16x16xf32>
    %219 = tpu.matmul %217, %218, %cst_78 {dimension_numbers = #tpu.dot_dimension_numbers<[1], [0], [0], [1], [0, 0, 1, 1], [], []>} : vector<16x16xf32>, vector<16x16xf32>, vector<16x16xf32> -> vector<16x16xf32>
    %c280 = arith.constant 280 : index
    %c0_79 = arith.constant 0 : index
    %220 = vector.load %arg1[%c280, %c0_79] : memref<288x128xf32, #tpu.memory_space<vmem>>, vector<1x16xf32>
    %221 = vector.broadcast %220 : vector<1x16xf32> to vector<16x16xf32>
    %222 = arith.addf %219, %221 : vector<16x16xf32>
    %c0_80 = arith.constant 0 : index
    %c0_81 = arith.constant 0 : index
    %223 = vector.load %arg2[%c0_80, %c0_81] : memref<16x16xf32, #tpu.memory_space<vmem>>, vector<16x16xf32>
    tpu.vector_store %arg2[%c0_80, %c0_81], %222 {strides = array<i32>} : memref<16x16xf32, #tpu.memory_space<vmem>>, vector<16x16xf32>,
    return
  }
}

</mosaic_0001>

<llo_original>
// kernel: tpu_custom_call.1
$region0: #{tpu_custom_call.1}
  #allocation0 [shape = 'u32[]', space=smem, size = 0x4, offset = 0x4, fixed_abs, tag = 'smem constant byte address 0x4 - core index']
  #allocation1 [shape = 'u32[144,128]{1,0:T(1,128)}', space=vmem, size = 0x12000, scoped, tag = 'internal scratch']
  %s0 = inlined_call_operand.vmem [shape: f32[16,4], index: 0, kind: input, shape index: {}]
  %s1 = inlined_call_operand.hbm [shape: f32[288,128], index: 1, kind: input, shape index: {}]
  %s2 = inlined_call_operand.hbm [shape: f32[16,16], index: 2, kind: output, shape index: {}]
  %s3 = sld [smem:[#allocation0]]
  $region22: #{tpu_custom_call.1} parent=0
    _
  %s5 = ssub.s32 1, %s3
  %s6 = scalar_select 0, %s5, %s3
  $region1: #{tpu_custom_call.1} parent=0
    #allocation2 [shape = 'u8[147456]{0}', space=vmem, size = 0x24000, scoped, tag = 'input window, operand 1, single buffered']
    #allocation3 [shape = 's32[1]{0}', space=sflag, size = 0x4, scoped, tag = 'scoped memory for tpu_custom_call.1']
    #allocation4 [shape = 's32[1]{0}', space=sflag, size = 0x4, scoped, tag = 'scoped memory for tpu_custom_call.1']
    #allocation5 [shape = 'u8[8192]{0}', space=vmem, size = 0x2000, scoped, tag = 'output window, operand 0, single buffered']
    %7 = vsyncpa [#allocation3], 0
    %8 = vsyncpa [#allocation4], 0
    // Predicated region
    $region2: #{tpu_custom_call.1} parent=1 // pred_check
      _
    $region3: #{tpu_custom_call.1} parent=1 // pred_check_branch
      %10 = sbr.rel (0) target = $region5
    $region4: #{tpu_custom_call.1} parent=1 // pred_region
      _
    $region5: #{tpu_custom_call.1} parent=1 // pred_fallthru
      _
    // Predicated region
    $region6: #{tpu_custom_call.1} parent=1 // pred_check
      _
    $region7: #{tpu_custom_call.1} parent=1 // pred_check_branch
      %12 = sbr.rel (0) target = $region9
    $region8: #{tpu_custom_call.1} parent=1 // pred_region
      %s14 = ssub.s32 4608, 4608
      %15 = vsyncadd [#allocation3], %s14
      %s16 = sshll.u32 [#allocation2], 4
      %s17 = int_to_ptr.vmem [resolvable:$true] %s16
      %22 = dma.hbm_to_vmem [thread:$0]  %s1, 4608, %s17, [#allocation3], 128, 128, 8
    $region9: #{tpu_custom_call.1} parent=1 // pred_fallthru
      _
    // Predicated region
    $region10: #{tpu_custom_call.1} parent=1 // pred_check
      _
    $region11: #{tpu_custom_call.1} parent=1 // pred_check_branch
      %24 = sbr.rel (0) target = $region13
    $region12: #{tpu_custom_call.1} parent=1 // pred_region
      %25 = dma.done [#allocation3], 4608
    $region13: #{tpu_custom_call.1} parent=1 // pred_fallthru
      _
    %v26 = vld [vmem:[%s0] sm:$0xff]
    %v27 = vld [vmem:[%s0 + $0x8] sm:$0xff]
    %v28 = vld [vmem:[#allocation2] sm:$0xf]
    %v29 = vld [vmem:[#allocation2 + $0x8] sm:$0x1]
    %v30 = vlaneseq
    %v31 = vshrl.u32 %v30, 7
    %v32 = vsub.s32 0, %v31
    %v33 = vrot.slane %v29, %v32
    %vm34 = vcmask 31744
    %v36 = vsel %vm34, %v26, 0
    %v39 = vsel %vm34, %v27, 0
    %vm41 = vcmask 1043456
    %v43 = vsel %vm41, %v28, 0
    %45 = vmatprep.subr.mxu0 0.0
    %46 = vmatpush1.msra.mxu0 %v43
    %47 = vmatprep.subr.mxu0 0.0
    %48 = vmatpush1.msra.mxu0 0.0
    %49 = vmatprep.subr.mxu0 0.0
    %50 = vmatpush1.msra.mxu0 0.0
    %51 = vmatprep.subr.mxu0 0.0
    %52 = vmatpush1.msra.mxu0 0.0
    %53 = vmatprep.subr.mxu0 0.0
    %54 = vmatpush1.msra.mxu0 0.0
    %55 = vmatprep.subr.mxu0 0.0
    %56 = vmatpush1.msra.mxu0 0.0
    %57 = vmatprep.subr.mxu0 0.0
    %58 = vmatpush1.msra.mxu0 0.0
    %59 = vmatprep.subr.mxu0 0.0
    %60 = vmatpush1.msra.mxu0 0.0
    %61 = vmatprep.subr.mxu0 0.0
    %62 = vmatpush1.msra.mxu0 0.0
    %63 = vmatprep.subr.mxu0 0.0
    %64 = vmatpush1.msra.mxu0 0.0
    %65 = vmatprep.subr.mxu0 0.0
    %66 = vmatpush1.msra.mxu0 0.0
    %67 = vmatprep.subr.mxu0 0.0
    %68 = vmatpush1.msra.mxu0 0.0
    %69 = vmatprep.subr.mxu0 0.0
    %70 = vmatpush1.msra.mxu0 0.0
    %71 = vmatprep.subr.mxu0 0.0
    %72 = vmatpush1.msra.mxu0 0.0
    %73 = vmatprep.subr.mxu0 0.0
    %74 = vmatpush1.msra.mxu0 0.0
    %75 = vmatprep.subr.mxu0 0.0
    %76 = vmatpush1.msra.mxu0 0.0
    %77 = vmatprep.subr.mxu0 0.0
    %78 = vmatpush1.msra.mxu0 0.0
    %79 = vmatprep.subr.mxu0 0.0
    %80 = vmatpush1.msra.mxu0 0.0
    %81 = vmatprep.subr.mxu0 0.0
    %82 = vmatpush1.msra.mxu0 0.0
    %83 = vmatprep.subr.mxu0 0.0
    %84 = vmatpush1.msra.mxu0 0.0
    %85 = vmatprep.subr.mxu0 0.0
    %86 = vmatpush1.msra.mxu0 0.0
    %87 = vmatprep.subr.mxu0 0.0
    %88 = vmatpush1.msra.mxu0 0.0
    %89 = vmatprep.subr.mxu0 0.0
    %90 = vmatpush1.msra.mxu0 0.0
    %91 = vmatprep.subr.mxu0 0.0
    %92 = vmatpush1.msra.mxu0 0.0
    %93 = vmatprep.subr.mxu0 0.0
    %94 = vmatpush1.msra.mxu0 0.0
    %95 = vmatprep.subr.mxu0 0.0
    %96 = vmatpush1.msra.mxu0 0.0
    %97 = vmatprep.subr.mxu0 0.0
    %98 = vmatpush1.msra.mxu0 0.0
    %99 = vmatprep.subr.mxu0 0.0
    %100 = vmatpush1.msra.mxu0 0.0
    %101 = vmatprep.subr.mxu0 0.0
    %102 = vmatpush1.msra.mxu0 0.0
    %103 = vmatprep.subr.mxu0 0.0
    %104 = vmatpush1.msra.mxu0 0.0
    %105 = vmatprep.subr.mxu0 0.0
    %106 = vmatpush1.msra.mxu0 0.0
    %107 = vmatprep.subr.mxu0 0.0
    %108 = vmatpush1.msra.mxu0 0.0
    %109 = vmatprep.mubr.f32.mxu0 0.0
    %110 = vmatmul.mubr.f32.gmra.mrb[0].mxu0 %v36
    %v111 = vpop.f32.mrb[0].mxu0
    %v112 = vadd.f32 %v33, %v111
    %v113 = vpop.f32.mrb[0].mxu0
    %114 = vmatprep.mubr.f32.mxu0 0.0
    %115 = vmatmul.mubr.f32.gmra.mrb[0].mxu0 %v39
    %v116 = vpop.f32.mrb[0].mxu0
    %v117 = vadd.f32 %v33, %v116
    %v118 = vpop.f32.mrb[0].mxu0
    %119 = vdwg.mxu0
    %v120 = vld [vmem:[#allocation2 + $0x10] sm:$0xff]
    %v121 = vld [vmem:[#allocation2 + $0x18] sm:$0x1]
    %v122 = vlaneseq
    %v123 = vshrl.u32 %v122, 7
    %v124 = vsub.s32 0, %v123
    %v125 = vrot.slane %v121, %v124
    %vm126 = vcmask 64512
    %v128 = vsel %vm126, %v112, 0
    %v131 = vsel %vm126, %v117, 0
    %133 = vmatprep.subr.mxu0 0.0
    %134 = vmatpush1.msra.mxu0 %v120
    %135 = vmatprep.subr.mxu0 0.0
    %136 = vmatpush1.msra.mxu0 0.0
    %137 = vmatprep.subr.mxu0 0.0
    %138 = vmatpush1.msra.mxu0 0.0
    %139 = vmatprep.subr.mxu0 0.0
    %140 = vmatpush1.msra.mxu0 0.0
    %141 = vmatprep.subr.mxu0 0.0
    %142 = vmatpush1.msra.mxu0 0.0
    %143 = vmatprep.subr.mxu0 0.0
    %144 = vmatpush1.msra.mxu0 0.0
    %145 = vmatprep.subr.mxu0 0.0
    %146 = vmatpush1.msra.mxu0 0.0
    %147 = vmatprep.subr.mxu0 0.0
    %148 = vmatpush1.msra.mxu0 0.0
    %149 = vmatprep.subr.mxu0 0.0
    %150 = vmatpush1.msra.mxu0 0.0
    %151 = vmatprep.subr.mxu0 0.0
    %152 = vmatpush1.msra.mxu0 0.0
    %153 = vmatprep.subr.mxu0 0.0
    %154 = vmatpush1.msra.mxu0 0.0
    %155 = vmatprep.subr.mxu0 0.0
    %156 = vmatpush1.msra.mxu0 0.0
    %157 = vmatprep.subr.mxu0 0.0
    %158 = vmatpush1.msra.mxu0 0.0
    %159 = vmatprep.subr.mxu0 0.0
    %160 = vmatpush1.msra.mxu0 0.0
    %161 = vmatprep.subr.mxu0 0.0
    %162 = vmatpush1.msra.mxu0 0.0
    %163 = vmatprep.subr.mxu0 0.0
    %164 = vmatpush1.msra.mxu0 0.0
    %165 = vmatprep.subr.mxu0 0.0
    %166 = vmatpush1.msra.mxu0 0.0
    %167 = vmatprep.subr.mxu0 0.0
    %168 = vmatpush1.msra.mxu0 0.0
    %169 = vmatprep.subr.mxu0 0.0
    %170 = vmatpush1.msra.mxu0 0.0
    %171 = vmatprep.subr.mxu0 0.0
    %172 = vmatpush1.msra.mxu0 0.0
    %173 = vmatprep.subr.mxu0 0.0
    %174 = vmatpush1.msra.mxu0 0.0
    %175 = vmatprep.subr.mxu0 0.0
    %176 = vmatpush1.msra.mxu0 0.0
    %177 = vmatprep.subr.mxu0 0.0
    %178 = vmatpush1.msra.mxu0 0.0
    %179 = vmatprep.subr.mxu0 0.0
    %180 = vmatpush1.msra.mxu0 0.0
    %181 = vmatprep.subr.mxu0 0.0
    %182 = vmatpush1.msra.mxu0 0.0
    %183 = vmatprep.subr.mxu0 0.0
    %184 = vmatpush1.msra.mxu0 0.0
    %185 = vmatprep.subr.mxu0 0.0
    %186 = vmatpush1.msra.mxu0 0.0
    %187 = vmatprep.subr.mxu0 0.0
    %188 = vmatpush1.msra.mxu0 0.0
    %189 = vmatprep.subr.mxu0 0.0
    %190 = vmatpush1.msra.mxu0 0.0
    %191 = vmatprep.subr.mxu0 0.0
    %192 = vmatpush1.msra.mxu0 0.0
    %193 = vmatprep.subr.mxu0 0.0
    %194 = vmatpush1.msra.mxu0 0.0
    %195 = vmatprep.subr.mxu0 0.0
    %196 = vmatpush1.msra.mxu0 0.0
    %197 = vmatprep.mubr.f32.mxu0 0.0
    %198 = vmatmul.mubr.f32.gmra.mrb[0].mxu0 %v128
    %v199 = vpop.f32.mrb[0].mxu0
    %v200 = vadd.f32 %v125, %v199
    %v201 = vpop.f32.mrb[0].mxu0
    %202 = vmatprep.mubr.f32.mxu0 0.0
    %203 = vmatmul.mubr.f32.gmra.mrb[0].mxu0 %v131
    %v204 = vpop.f32.mrb[0].mxu0
    %v205 = vadd.f32 %v125, %v204
    %v206 = vpop.f32.mrb[0].mxu0
    %207 = vdwg.mxu0
    %vm208 = vcmp.ge.f32.partialorder %v200, 0.0
    %vm209 = vcmp.ge.f32.partialorder %v205, 0.0
    %v210 = vmul.f32 %v200, 0.01
    %v211 = vmul.f32 %v205, 0.01
    %v212 = vsel %vm208, %v200, %v210
    %v213 = vsel %vm209, %v205, %v211
    %v214 = vld [vmem:[#allocation2 + $0x20] sm:$0x7]
    %v215 = vld [vmem:[#allocation2 + $0x28] sm:$0x1]
    %v216 = vlaneseq
    %v217 = vshrl.u32 %v216, 7
    %v218 = vadd.s32 %v217, 8
    %vm219 = vcmp.lt.s32.totalorder %v217, 0
    %v220 = vsub.s32 0, %v217
    %v221 = vsel %vm219, %v220, %v217
    %v222 = vshrl.u32 %v221, 3
    %v223 = vand.u32 %v221, 7
    %v224 = vsub.s32 0, %v223
    %v225 = vsel %vm219, %v224, %v223
    %vm226 = vcmp.lt.s32.totalorder %v218, 0
    %v227 = vsub.s32 0, %v218
    %v228 = vsel %vm226, %v227, %v218
    %v229 = vshrl.u32 %v228, 3
    %v230 = vand.u32 %v228, 7
    %v231 = vsub.s32 0, %v230
    %v232 = vsel %vm226, %v231, %v230
    %vm233 = vcmp.ne.s32.totalorder %v225, 0
    %vm234 = vcmp.ne.s32.totalorder %v232, 0
    %vm235 = vcmp.lt.s32.totalorder %v225, 0
    %vm236 = vcmp.lt.s32.totalorder %v232, 0
    %vm237 = vmand %vm235, %vm233
    %vm238 = vmand %vm236, %vm234
    %v239 = vadd.s32 %v225, 8
    %v240 = vadd.s32 %v232, 8
    %v241 = vsel %vm237, %v239, %v225
    %v242 = vsel %vm238, %v240, %v232
    %vm243 = vcmp.eq.s32.totalorder %v241, 0
    %vm244 = vcmp.eq.s32.totalorder %v242, 0
    %v245 = vrot.slane %v212, 7
    %v246 = vrot.slane %v213, 7
    %vm247 = vcmp.lt.s32.totalorder %v217, 1
    %v248 = vsel %vm247, %v245, %v246
    %v249 = vsel %vm247, %v246, %v245
    %v250 = vsel %vm243, 0.0, %v249
    %v251 = vsel %vm244, 0.0, %v248
    %vm252 = vcmp.eq.s32.totalorder %v241, 7
    %vm253 = vcmp.eq.s32.totalorder %v242, 7
    %v254 = vrot.slane %v212, 1
    %v255 = vrot.slane %v213, 1
    %vm256 = vcmp.lt.s32.totalorder %v217, 7
    %v257 = vsel %vm256, %v254, %v255
    %v258 = vsel %vm256, %v255, %v254
    %v259 = vsel %vm252, 0.0, %v257
    %v260 = vsel %vm253, 0.0, %v258
    %v261 = vlaneseq
    %v262 = vshrl.u32 %v261, 7
    %v263 = vsub.s32 0, %v262
    %v264 = vrot.slane %v214, %v263
    %v265 = vmul.f32 %v250, %v264
    %v266 = vmul.f32 %v251, %v264
    %v267 = vlaneseq
    %v268 = vshrl.u32 %v267, 7
    %v269 = vsub.s32 1, %v268
    %v270 = vrot.slane %v214, %v269
    %v271 = vmul.f32 %v212, %v270
    %v272 = vmul.f32 %v213, %v270
    %v273 = vadd.f32 %v265, %v271
    %v274 = vadd.f32 %v266, %v272
    %v275 = vlaneseq
    %v276 = vshrl.u32 %v275, 7
    %v277 = vsub.s32 2, %v276
    %v278 = vrot.slane %v214, %v277
    %v279 = vmul.f32 %v259, %v278
    %v280 = vmul.f32 %v260, %v278
    %v281 = vadd.f32 %v273, %v279
    %v282 = vadd.f32 %v274, %v280
    %v283 = vlaneseq
    %v284 = vshrl.u32 %v283, 7
    %v285 = vsub.s32 0, %v284
    %v286 = vrot.slane %v215, %v285
    %v287 = vadd.f32 %v281, %v286
    %v288 = vadd.f32 %v282, %v286
    %v289 = vld [vmem:[#allocation2 + $0x30] sm:$0xff]
    %v290 = vld [vmem:[#allocation2 + $0x38] sm:$0xff]
    %v291 = vld [vmem:[#allocation2 + $0x40] sm:$0xff]
    %v292 = vld [vmem:[#allocation2 + $0x48] sm:$0xff]
    %v293 = vld [vmem:[#allocation2 + $0x50] sm:$0xff]
    %v294 = vld [vmem:[#allocation2 + $0x58] sm:$0xff]
    %v295 = vld [vmem:[#allocation2 + $0x60] sm:$0x1]
    %v296 = vlaneseq
    %v297 = vshrl.u32 %v296, 7
    %v298 = vsub.s32 0, %v297
    %v299 = vrot.slane %v295, %v298
    %vm300 = vcmask 392192
    %v302 = vsel %vm300, %v287, 0
    %v305 = vsel %vm300, %v288, 0
    %307 = vmatprep.subr.mxu0 0.0
    %308 = vmatpush1.msra.mxu0 %v289
    %309 = vmatprep.subr.mxu0 0.0
    %310 = vmatpush1.msra.mxu0 %v290
    %311 = vmatprep.subr.mxu0 0.0
    %312 = vmatpush1.msra.mxu0 %v291
    %313 = vmatprep.subr.mxu0 0.0
    %314 = vmatpush1.msra.mxu0 %v292
    %315 = vmatprep.subr.mxu0 0.0
    %316 = vmatpush1.msra.mxu0 %v293
    %317 = vmatprep.subr.mxu0 0.0
    %318 = vmatpush1.msra.mxu0 %v294
    %319 = vmatprep.subr.mxu0 0.0
    %320 = vmatpush1.msra.mxu0 0.0
    %321 = vmatprep.subr.mxu0 0.0
    %322 = vmatpush1.msra.mxu0 0.0
    %323 = vmatprep.subr.mxu0 0.0
    %324 = vmatpush1.msra.mxu0 0.0
    %325 = vmatprep.subr.mxu0 0.0
    %326 = vmatpush1.msra.mxu0 0.0
    %327 = vmatprep.subr.mxu0 0.0
    %328 = vmatpush1.msra.mxu0 0.0
    %329 = vmatprep.subr.mxu0 0.0
    %330 = vmatpush1.msra.mxu0 0.0
    %331 = vmatprep.subr.mxu0 0.0
    %332 = vmatpush1.msra.mxu0 0.0
    %333 = vmatprep.subr.mxu0 0.0
    %334 = vmatpush1.msra.mxu0 0.0
    %335 = vmatprep.subr.mxu0 0.0
    %336 = vmatpush1.msra.mxu0 0.0
    %337 = vmatprep.subr.mxu0 0.0
    %338 = vmatpush1.msra.mxu0 0.0
    %339 = vmatprep.subr.mxu0 0.0
    %340 = vmatpush1.msra.mxu0 0.0
    %341 = vmatprep.subr.mxu0 0.0
    %342 = vmatpush1.msra.mxu0 0.0
    %343 = vmatprep.subr.mxu0 0.0
    %344 = vmatpush1.msra.mxu0 0.0
    %345 = vmatprep.subr.mxu0 0.0
    %346 = vmatpush1.msra.mxu0 0.0
    %347 = vmatprep.subr.mxu0 0.0
    %348 = vmatpush1.msra.mxu0 0.0
    %349 = vmatprep.subr.mxu0 0.0
    %350 = vmatpush1.msra.mxu0 0.0
    %351 = vmatprep.subr.mxu0 0.0
    %352 = vmatpush1.msra.mxu0 0.0
    %353 = vmatprep.subr.mxu0 0.0
    %354 = vmatpush1.msra.mxu0 0.0
    %355 = vmatprep.subr.mxu0 0.0
    %356 = vmatpush1.msra.mxu0 0.0
    %357 = vmatprep.subr.mxu0 0.0
    %358 = vmatpush1.msra.mxu0 0.0
    %359 = vmatprep.subr.mxu0 0.0
    %360 = vmatpush1.msra.mxu0 0.0
    %361 = vmatprep.subr.mxu0 0.0
    %362 = vmatpush1.msra.mxu0 0.0
    %363 = vmatprep.subr.mxu0 0.0
    %364 = vmatpush1.msra.mxu0 0.0
    %365 = vmatprep.subr.mxu0 0.0
    %366 = vmatpush1.msra.mxu0 0.0
    %367 = vmatprep.subr.mxu0 0.0
    %368 = vmatpush1.msra.mxu0 0.0
    %369 = vmatprep.subr.mxu0 0.0
    %370 = vmatpush1.msra.mxu0 0.0
    %371 = vmatprep.mubr.f32.mxu0 0.0
    %372 = vmatmul.mubr.f32.gmra.mrb[0].mxu0 %v302
    %v373 = vpop.f32.mrb[0].mxu0
    %v374 = vadd.f32 %v299, %v373
    %v375 = vpop.f32.mrb[0].mxu0
    %376 = vmatprep.mubr.f32.mxu0 0.0
    %377 = vmatmul.mubr.f32.gmra.mrb[0].mxu0 %v305
    %v378 = vpop.f32.mrb[0].mxu0
    %v379 = vadd.f32 %v299, %v378
    %v380 = vpop.f32.mrb[0].mxu0
    %381 = vdwg.mxu0
    %vm382 = vcmp.ge.f32.partialorder %v374, 0.0
    %vm383 = vcmp.ge.f32.partialorder %v379, 0.0
    %v384 = vmul.f32 %v374, 0.01
    %v385 = vmul.f32 %v379, 0.01
    %v386 = vsel %vm382, %v374, %v384
    %v387 = vsel %vm383, %v379, %v385
    %v388 = vsel %vm126, %v386, 0.0
    %v389 = vrot.slane %v388, 4
    %v390 = vadd.f32 %v388, %v389
    %v391 = vrot.slane %v390, 2
    %v392 = vadd.f32 %v390, %v391
    %v393 = vrot.slane %v392, 1
    %v394 = vadd.f32 %v392, %v393
    %v395 = vrcp.pop 8.0
    %v396 = vmul.f32 %v394, %v395
    %v397 = vsel %vm126, %v387, 0.0
    %v398 = vrot.slane %v397, 4
    %v399 = vadd.f32 %v397, %v398
    %v400 = vrot.slane %v399, 2
    %v401 = vadd.f32 %v399, %v400
    %v402 = vrot.slane %v401, 1
    %v403 = vadd.f32 %v401, %v402
    %v404 = vmul.f32 %v403, %v395
    %vm405 = vcmask 1040384
    %v406 = vsel %vm405, %v396, %v404
    %v407 = vld [vmem:[#allocation2 + $0x68] sm:$0xff]
    %v408 = vld [vmem:[#allocation2 + $0x70] sm:$0x1]
    %v409 = vlaneseq
    %v410 = vshrl.u32 %v409, 7
    %v411 = vsub.s32 0, %v410
    %v412 = vrot.slane %v408, %v411
    %v414 = vsel %vm126, %v406, 0
    %416 = vmatprep.subr.mxu0 0.0
    %417 = vmatpush1.msra.mxu0 %v407
    %418 = vmatprep.subr.mxu0 0.0
    %419 = vmatpush1.msra.mxu0 0.0
    %420 = vmatprep.subr.mxu0 0.0
    %421 = vmatpush1.msra.mxu0 0.0
    %422 = vmatprep.subr.mxu0 0.0
    %423 = vmatpush1.msra.mxu0 0.0
    %424 = vmatprep.subr.mxu0 0.0
    %425 = vmatpush1.msra.mxu0 0.0
    %426 = vmatprep.subr.mxu0 0.0
    %427 = vmatpush1.msra.mxu0 0.0
    %428 = vmatprep.subr.mxu0 0.0
    %429 = vmatpush1.msra.mxu0 0.0
    %430 = vmatprep.subr.mxu0 0.0
    %431 = vmatpush1.msra.mxu0 0.0
    %432 = vmatprep.subr.mxu0 0.0
    %433 = vmatpush1.msra.mxu0 0.0
    %434 = vmatprep.subr.mxu0 0.0
    %435 = vmatpush1.msra.mxu0 0.0
    %436 = vmatprep.subr.mxu0 0.0
    %437 = vmatpush1.msra.mxu0 0.0
    %438 = vmatprep.subr.mxu0 0.0
    %439 = vmatpush1.msra.mxu0 0.0
    %440 = vmatprep.subr.mxu0 0.0
    %441 = vmatpush1.msra.mxu0 0.0
    %442 = vmatprep.subr.mxu0 0.0
    %443 = vmatpush1.msra.mxu0 0.0
    %444 = vmatprep.subr.mxu0 0.0
    %445 = vmatpush1.msra.mxu0 0.0
    %446 = vmatprep.subr.mxu0 0.0
    %447 = vmatpush1.msra.mxu0 0.0
    %448 = vmatprep.subr.mxu0 0.0
    %449 = vmatpush1.msra.mxu0 0.0
    %450 = vmatprep.subr.mxu0 0.0
    %451 = vmatpush1.msra.mxu0 0.0
    %452 = vmatprep.subr.mxu0 0.0
    %453 = vmatpush1.msra.mxu0 0.0
    %454 = vmatprep.subr.mxu0 0.0
    %455 = vmatpush1.msra.mxu0 0.0
    %456 = vmatprep.subr.mxu0 0.0
    %457 = vmatpush1.msra.mxu0 0.0
    %458 = vmatprep.subr.mxu0 0.0
    %459 = vmatpush1.msra.mxu0 0.0
    %460 = vmatprep.subr.mxu0 0.0
    %461 = vmatpush1.msra.mxu0 0.0
    %462 = vmatprep.subr.mxu0 0.0
    %463 = vmatpush1.msra.mxu0 0.0
    %464 = vmatprep.subr.mxu0 0.0
    %465 = vmatpush1.msra.mxu0 0.0
    %466 = vmatprep.subr.mxu0 0.0
    %467 = vmatpush1.msra.mxu0 0.0
    %468 = vmatprep.subr.mxu0 0.0
    %469 = vmatpush1.msra.mxu0 0.0
    %470 = vmatprep.subr.mxu0 0.0
    %471 = vmatpush1.msra.mxu0 0.0
    %472 = vmatprep.subr.mxu0 0.0
    %473 = vmatpush1.msra.mxu0 0.0
    %474 = vmatprep.subr.mxu0 0.0
    %475 = vmatpush1.msra.mxu0 0.0
    %476 = vmatprep.subr.mxu0 0.0
    %477 = vmatpush1.msra.mxu0 0.0
    %478 = vmatprep.subr.mxu0 0.0
    %479 = vmatpush1.msra.mxu0 0.0
    %480 = vmatprep.mubr.f32.mxu0 0.0
    %481 = vmatmul.mubr.f32.gmra.mrb[0].mxu0 %v414
    %v482 = vpop.f32.mrb[0].mxu0
    %v483 = vadd.f32 %v412, %v482
    %v484 = vpop.f32.mrb[0].mxu0
    %485 = vdwg.mxu0
    %vm486 = vcmp.ge.f32.partialorder %v483, 0.0
    %v487 = vmul.f32 %v483, 0.01
    %v488 = vsel %vm486, %v483, %v487
    %v489 = vld [vmem:[#allocation2 + $0x78] sm:$0xf]
    %v490 = vld [vmem:[#allocation2 + $0x80] sm:$0x1]
    %v491 = vlaneseq
    %v492 = vshrl.u32 %v491, 7
    %v493 = vsub.s32 0, %v492
    %v494 = vrot.slane %v490, %v493
    %v496 = vsel %vm34, %v488, 0
    %v499 = vsel %vm41, %v489, 0
    %501 = vmatprep.subr.mxu0 0.0
    %502 = vmatpush1.msra.mxu0 %v499
    %503 = vmatprep.subr.mxu0 0.0
    %504 = vmatpush1.msra.mxu0 0.0
    %505 = vmatprep.subr.mxu0 0.0
    %506 = vmatpush1.msra.mxu0 0.0
    %507 = vmatprep.subr.mxu0 0.0
    %508 = vmatpush1.msra.mxu0 0.0
    %509 = vmatprep.subr.mxu0 0.0
    %510 = vmatpush1.msra.mxu0 0.0
    %511 = vmatprep.subr.mxu0 0.0
    %512 = vmatpush1.msra.mxu0 0.0
    %513 = vmatprep.subr.mxu0 0.0
    %514 = vmatpush1.msra.mxu0 0.0
    %515 = vmatprep.subr.mxu0 0.0
    %516 = vmatpush1.msra.mxu0 0.0
    %517 = vmatprep.subr.mxu0 0.0
    %518 = vmatpush1.msra.mxu0 0.0
    %519 = vmatprep.subr.mxu0 0.0
    %520 = vmatpush1.msra.mxu0 0.0
    %521 = vmatprep.subr.mxu0 0.0
    %522 = vmatpush1.msra.mxu0 0.0
    %523 = vmatprep.subr.mxu0 0.0
    %524 = vmatpush1.msra.mxu0 0.0
    %525 = vmatprep.subr.mxu0 0.0
    %526 = vmatpush1.msra.mxu0 0.0
    %527 = vmatprep.subr.mxu0 0.0
    %528 = vmatpush1.msra.mxu0 0.0
    %529 = vmatprep.subr.mxu0 0.0
    %530 = vmatpush1.msra.mxu0 0.0
    %531 = vmatprep.subr.mxu0 0.0
    %532 = vmatpush1.msra.mxu0 0.0
    %533 = vmatprep.subr.mxu0 0.0
    %534 = vmatpush1.msra.mxu0 0.0
    %535 = vmatprep.subr.mxu0 0.0
    %536 = vmatpush1.msra.mxu0 0.0
    %537 = vmatprep.subr.mxu0 0.0
    %538 = vmatpush1.msra.mxu0 0.0
    %539 = vmatprep.subr.mxu0 0.0
    %540 = vmatpush1.msra.mxu0 0.0
    %541 = vmatprep.subr.mxu0 0.0
    %542 = vmatpush1.msra.mxu0 0.0
    %543 = vmatprep.subr.mxu0 0.0
    %544 = vmatpush1.msra.mxu0 0.0
    %545 = vmatprep.subr.mxu0 0.0
    %546 = vmatpush1.msra.mxu0 0.0
    %547 = vmatprep.subr.mxu0 0.0
    %548 = vmatpush1.msra.mxu0 0.0
    %549 = vmatprep.subr.mxu0 0.0
    %550 = vmatpush1.msra.mxu0 0.0
    %551 = vmatprep.subr.mxu0 0.0
    %552 = vmatpush1.msra.mxu0 0.0
    %553 = vmatprep.subr.mxu0 0.0
    %554 = vmatpush1.msra.mxu0 0.0
    %555 = vmatprep.subr.mxu0 0.0
    %556 = vmatpush1.msra.mxu0 0.0
    %557 = vmatprep.subr.mxu0 0.0
    %558 = vmatpush1.msra.mxu0 0.0
    %559 = vmatprep.subr.mxu0 0.0
    %560 = vmatpush1.msra.mxu0 0.0
    %561 = vmatprep.subr.mxu0 0.0
    %562 = vmatpush1.msra.mxu0 0.0
    %563 = vmatprep.subr.mxu0 0.0
    %564 = vmatpush1.msra.mxu0 0.0
    %565 = vmatprep.mubr.f32.mxu0 0.0
    %566 = vmatmul.mubr.f32.gmra.mrb[0].mxu0 %v496
    %v567 = vpop.f32.mrb[0].mxu0
    %v568 = vadd.f32 %v494, %v567
    %v569 = vpop.f32.mrb[0].mxu0
    %570 = vdwg.mxu0
    %v571 = vsub.f32 0.0, %v568
    %v572 = vmul.f32 %v571, 1.442695
    %v573 = vpow.pop %v572
    %v574 = vadd.f32 %v573, 1.0
    %v575 = vrcp.pop %v574
    %v576 = vmul.f32 1.0, %v575
    %v577 = vlaneseq
    %v578 = vshrl.u32 %v577, 7
    %v579 = vsub.s32 0, %v578
    %v580 = vrot.slane %v576, %v579
    %v581 = vlaneseq
    %v582 = vshrl.u32 %v581, 7
    %v583 = vsub.s32 1, %v582
    %v584 = vrot.slane %v576, %v583
    %v585 = vmul.f32 %v386, %v580
    %v586 = vmul.f32 %v387, %v584
    %589 = vrot.lane.b32.xlu0 %v200, 80
    %v590 = vpop.permute.xlu0 %589
    %591 = vrot.lane.b32.xlu0 %v205, 80
    %v592 = vpop.permute.xlu0 %591
    %v595 = vadd.f32 %v585, %v590
    %v596 = vadd.f32 %v586, %v592
    %v597 = vld [vmem:[#allocation2 + $0x88] sm:$0xff]
    %v598 = vld [vmem:[#allocation2 + $0x90] sm:$0x1]
    %v599 = vlaneseq
    %v600 = vshrl.u32 %v599, 7
    %v601 = vsub.s32 0, %v600
    %v602 = vrot.slane %v598, %v601
    %v604 = vsel %vm126, %v595, 0
    %v607 = vsel %vm126, %v596, 0
    %609 = vmatprep.subr.mxu0 0.0
    %610 = vmatpush1.msra.mxu0 %v597
    %611 = vmatprep.subr.mxu0 0.0
    %612 = vmatpush1.msra.mxu0 0.0
    %613 = vmatprep.subr.mxu0 0.0
    %614 = vmatpush1.msra.mxu0 0.0
    %615 = vmatprep.subr.mxu0 0.0
    %616 = vmatpush1.msra.mxu0 0.0
    %617 = vmatprep.subr.mxu0 0.0
    %618 = vmatpush1.msra.mxu0 0.0
    %619 = vmatprep.subr.mxu0 0.0
    %620 = vmatpush1.msra.mxu0 0.0
    %621 = vmatprep.subr.mxu0 0.0
    %622 = vmatpush1.msra.mxu0 0.0
    %623 = vmatprep.subr.mxu0 0.0
    %624 = vmatpush1.msra.mxu0 0.0
    %625 = vmatprep.subr.mxu0 0.0
    %626 = vmatpush1.msra.mxu0 0.0
    %627 = vmatprep.subr.mxu0 0.0
    %628 = vmatpush1.msra.mxu0 0.0
    %629 = vmatprep.subr.mxu0 0.0
    %630 = vmatpush1.msra.mxu0 0.0
    %631 = vmatprep.subr.mxu0 0.0
    %632 = vmatpush1.msra.mxu0 0.0
    %633 = vmatprep.subr.mxu0 0.0
    %634 = vmatpush1.msra.mxu0 0.0
    %635 = vmatprep.subr.mxu0 0.0
    %636 = vmatpush1.msra.mxu0 0.0
    %637 = vmatprep.subr.mxu0 0.0
    %638 = vmatpush1.msra.mxu0 0.0
    %639 = vmatprep.subr.mxu0 0.0
    %640 = vmatpush1.msra.mxu0 0.0
    %641 = vmatprep.subr.mxu0 0.0
    %642 = vmatpush1.msra.mxu0 0.0
    %643 = vmatprep.subr.mxu0 0.0
    %644 = vmatpush1.msra.mxu0 0.0
    %645 = vmatprep.subr.mxu0 0.0
    %646 = vmatpush1.msra.mxu0 0.0
    %647 = vmatprep.subr.mxu0 0.0
    %648 = vmatpush1.msra.mxu0 0.0
    %649 = vmatprep.subr.mxu0 0.0
    %650 = vmatpush1.msra.mxu0 0.0
    %651 = vmatprep.subr.mxu0 0.0
    %652 = vmatpush1.msra.mxu0 0.0
    %653 = vmatprep.subr.mxu0 0.0
    %654 = vmatpush1.msra.mxu0 0.0
    %655 = vmatprep.subr.mxu0 0.0
    %656 = vmatpush1.msra.mxu0 0.0
    %657 = vmatprep.subr.mxu0 0.0
    %658 = vmatpush1.msra.mxu0 0.0
    %659 = vmatprep.subr.mxu0 0.0
    %660 = vmatpush1.msra.mxu0 0.0
    %661 = vmatprep.subr.mxu0 0.0
    %662 = vmatpush1.msra.mxu0 0.0
    %663 = vmatprep.subr.mxu0 0.0
    %664 = vmatpush1.msra.mxu0 0.0
    %665 = vmatprep.subr.mxu0 0.0
    %666 = vmatpush1.msra.mxu0 0.0
    %667 = vmatprep.subr.mxu0 0.0
    %668 = vmatpush1.msra.mxu0 0.0
    %669 = vmatprep.subr.mxu0 0.0
    %670 = vmatpush1.msra.mxu0 0.0
    %671 = vmatprep.subr.mxu0 0.0
    %672 = vmatpush1.msra.mxu0 0.0
    %673 = vmatprep.mubr.f32.mxu0 0.0
    %674 = vmatmul.mubr.f32.gmra.mrb[0].mxu0 %v604
    %v675 = vpop.f32.mrb[0].mxu0
    %v676 = vadd.f32 %v602, %v675
    %v677 = vpop.f32.mrb[0].mxu0
    %678 = vmatprep.mubr.f32.mxu0 0.0
    %679 = vmatmul.mubr.f32.gmra.mrb[0].mxu0 %v607
    %v680 = vpop.f32.mrb[0].mxu0
    %v681 = vadd.f32 %v602, %v680
    %v682 = vpop.f32.mrb[0].mxu0
    %683 = vdwg.mxu0
    %vm684 = vcmp.ge.f32.partialorder %v676, 0.0
    %vm685 = vcmp.ge.f32.partialorder %v681, 0.0
    %v686 = vmul.f32 %v676, 0.01
    %v687 = vmul.f32 %v681, 0.01
    %v688 = vsel %vm684, %v676, %v686
    %v689 = vsel %vm685, %v681, %v687
    %v690 = vld [vmem:[#allocation2 + $0x98] sm:$0x7]
    %v691 = vld [vmem:[#allocation2 + $0xa0] sm:$0x1]
    %v692 = vrot.slane %v688, 7
    %v693 = vrot.slane %v689, 7
    %v694 = vsel %vm247, %v692, %v693
    %v695 = vsel %vm247, %v693, %v692
    %v696 = vsel %vm243, 0.0, %v695
    %v697 = vsel %vm244, 0.0, %v694
    %v698 = vrot.slane %v688, 1
    %v699 = vrot.slane %v689, 1
    %v700 = vsel %vm256, %v698, %v699
    %v701 = vsel %vm256, %v699, %v698
    %v702 = vsel %vm252, 0.0, %v700
    %v703 = vsel %vm253, 0.0, %v701
    %v704 = vlaneseq
    %v705 = vshrl.u32 %v704, 7
    %v706 = vsub.s32 0, %v705
    %v707 = vrot.slane %v690, %v706
    %v708 = vmul.f32 %v696, %v707
    %v709 = vmul.f32 %v697, %v707
    %v710 = vlaneseq
    %v711 = vshrl.u32 %v710, 7
    %v712 = vsub.s32 1, %v711
    %v713 = vrot.slane %v690, %v712
    %v714 = vmul.f32 %v688, %v713
    %v715 = vmul.f32 %v689, %v713
    %v716 = vadd.f32 %v708, %v714
    %v717 = vadd.f32 %v709, %v715
    %v718 = vlaneseq
    %v719 = vshrl.u32 %v718, 7
    %v720 = vsub.s32 2, %v719
    %v721 = vrot.slane %v690, %v720
    %v722 = vmul.f32 %v702, %v721
    %v723 = vmul.f32 %v703, %v721
    %v724 = vadd.f32 %v716, %v722
    %v725 = vadd.f32 %v717, %v723
    %v726 = vlaneseq
    %v727 = vshrl.u32 %v726, 7
    %v728 = vsub.s32 0, %v727
    %v729 = vrot.slane %v691, %v728
    %v730 = vadd.f32 %v724, %v729
    %v731 = vadd.f32 %v725, %v729
    %v732 = vld [vmem:[#allocation2 + $0xa8] sm:$0xff]
    %v733 = vld [vmem:[#allocation2 + $0xb0] sm:$0xff]
    %v734 = vld [vmem:[#allocation2 + $0xb8] sm:$0xff]
    %v735 = vld [vmem:[#allocation2 + $0xc0] sm:$0xff]
    %v736 = vld [vmem:[#allocation2 + $0xc8] sm:$0xff]
    %v737 = vld [vmem:[#allocation2 + $0xd0] sm:$0xff]
    %v738 = vld [vmem:[#allocation2 + $0xd8] sm:$0x1]
    %v739 = vlaneseq
    %v740 = vshrl.u32 %v739, 7
    %v741 = vsub.s32 0, %v740
    %v742 = vrot.slane %v738, %v741
    %v744 = vsel %vm300, %v730, 0
    %v747 = vsel %vm300, %v731, 0
    %749 = vmatprep.subr.mxu0 0.0
    %750 = vmatpush1.msra.mxu0 %v732
    %751 = vmatprep.subr.mxu0 0.0
    %752 = vmatpush1.msra.mxu0 %v733
    %753 = vmatprep.subr.mxu0 0.0
    %754 = vmatpush1.msra.mxu0 %v734
    %755 = vmatprep.subr.mxu0 0.0
    %756 = vmatpush1.msra.mxu0 %v735
    %757 = vmatprep.subr.mxu0 0.0
    %758 = vmatpush1.msra.mxu0 %v736
    %759 = vmatprep.subr.mxu0 0.0
    %760 = vmatpush1.msra.mxu0 %v737
    %761 = vmatprep.subr.mxu0 0.0
    %762 = vmatpush1.msra.mxu0 0.0
    %763 = vmatprep.subr.mxu0 0.0
    %764 = vmatpush1.msra.mxu0 0.0
    %765 = vmatprep.subr.mxu0 0.0
    %766 = vmatpush1.msra.mxu0 0.0
    %767 = vmatprep.subr.mxu0 0.0
    %768 = vmatpush1.msra.mxu0 0.0
    %769 = vmatprep.subr.mxu0 0.0
    %770 = vmatpush1.msra.mxu0 0.0
    %771 = vmatprep.subr.mxu0 0.0
    %772 = vmatpush1.msra.mxu0 0.0
    %773 = vmatprep.subr.mxu0 0.0
    %774 = vmatpush1.msra.mxu0 0.0
    %775 = vmatprep.subr.mxu0 0.0
    %776 = vmatpush1.msra.mxu0 0.0
    %777 = vmatprep.subr.mxu0 0.0
    %778 = vmatpush1.msra.mxu0 0.0
    %779 = vmatprep.subr.mxu0 0.0
    %780 = vmatpush1.msra.mxu0 0.0
    %781 = vmatprep.subr.mxu0 0.0
    %782 = vmatpush1.msra.mxu0 0.0
    %783 = vmatprep.subr.mxu0 0.0
    %784 = vmatpush1.msra.mxu0 0.0
    %785 = vmatprep.subr.mxu0 0.0
    %786 = vmatpush1.msra.mxu0 0.0
    %787 = vmatprep.subr.mxu0 0.0
    %788 = vmatpush1.msra.mxu0 0.0
    %789 = vmatprep.subr.mxu0 0.0
    %790 = vmatpush1.msra.mxu0 0.0
    %791 = vmatprep.subr.mxu0 0.0
    %792 = vmatpush1.msra.mxu0 0.0
    %793 = vmatprep.subr.mxu0 0.0
    %794 = vmatpush1.msra.mxu0 0.0
    %795 = vmatprep.subr.mxu0 0.0
    %796 = vmatpush1.msra.mxu0 0.0
    %797 = vmatprep.subr.mxu0 0.0
    %798 = vmatpush1.msra.mxu0 0.0
    %799 = vmatprep.subr.mxu0 0.0
    %800 = vmatpush1.msra.mxu0 0.0
    %801 = vmatprep.subr.mxu0 0.0
    %802 = vmatpush1.msra.mxu0 0.0
    %803 = vmatprep.subr.mxu0 0.0
    %804 = vmatpush1.msra.mxu0 0.0
    %805 = vmatprep.subr.mxu0 0.0
    %806 = vmatpush1.msra.mxu0 0.0
    %807 = vmatprep.subr.mxu0 0.0
    %808 = vmatpush1.msra.mxu0 0.0
    %809 = vmatprep.subr.mxu0 0.0
    %810 = vmatpush1.msra.mxu0 0.0
    %811 = vmatprep.subr.mxu0 0.0
    %812 = vmatpush1.msra.mxu0 0.0
    %813 = vmatprep.mubr.f32.mxu0 0.0
    %814 = vmatmul.mubr.f32.gmra.mrb[0].mxu0 %v744
    %v815 = vpop.f32.mrb[0].mxu0
    %v816 = vadd.f32 %v742, %v815
    %v817 = vpop.f32.mrb[0].mxu0
    %818 = vmatprep.mubr.f32.mxu0 0.0
    %819 = vmatmul.mubr.f32.gmra.mrb[0].mxu0 %v747
    %v820 = vpop.f32.mrb[0].mxu0
    %v821 = vadd.f32 %v742, %v820
    %v822 = vpop.f32.mrb[0].mxu0
    %823 = vdwg.mxu0
    %vm824 = vcmp.ge.f32.partialorder %v816, 0.0
    %vm825 = vcmp.ge.f32.partialorder %v821, 0.0
    %v826 = vmul.f32 %v816, 0.01
    %v827 = vmul.f32 %v821, 0.01
    %v828 = vsel %vm824, %v816, %v826
    %v829 = vsel %vm825, %v821, %v827
    %vm830 = vcmask 130048
    %v831 = vsel %vm830, %v828, 0.0
    %v832 = vrot.slane %v831, 4
    %v833 = vadd.f32 %v831, %v832
    %v834 = vrot.slane %v833, 2
    %v835 = vadd.f32 %v833, %v834
    %v836 = vrot.slane %v835, 1
    %v837 = vadd.f32 %v835, %v836
    %v838 = vmul.f32 %v837, %v395
    %v839 = vsel %vm830, %v829, 0.0
    %v840 = vrot.slane %v839, 4
    %v841 = vadd.f32 %v839, %v840
    %v842 = vrot.slane %v841, 2
    %v843 = vadd.f32 %v841, %v842
    %v844 = vrot.slane %v843, 1
    %v845 = vadd.f32 %v843, %v844
    %v846 = vmul.f32 %v845, %v395
    %v847 = vsel %vm405, %v838, %v846
    %v848 = vld [vmem:[#allocation2 + $0xe0] sm:$0xff]
    %v849 = vld [vmem:[#allocation2 + $0xe8] sm:$0xff]
    %v850 = vld [vmem:[#allocation2 + $0xf0] sm:$0x1]
    %v851 = vlaneseq
    %v852 = vshrl.u32 %v851, 7
    %v853 = vsub.s32 0, %v852
    %v854 = vrot.slane %v850, %v853
    %v856 = vsel %vm830, %v847, 0
    %858 = vmatprep.subr.mxu0 0.0
    %859 = vmatpush1.msra.mxu0 %v848
    %860 = vmatprep.subr.mxu0 0.0
    %861 = vmatpush1.msra.mxu0 %v849
    %862 = vmatprep.subr.mxu0 0.0
    %863 = vmatpush1.msra.mxu0 0.0
    %864 = vmatprep.subr.mxu0 0.0
    %865 = vmatpush1.msra.mxu0 0.0
    %866 = vmatprep.subr.mxu0 0.0
    %867 = vmatpush1.msra.mxu0 0.0
    %868 = vmatprep.subr.mxu0 0.0
    %869 = vmatpush1.msra.mxu0 0.0
    %870 = vmatprep.subr.mxu0 0.0
    %871 = vmatpush1.msra.mxu0 0.0
    %872 = vmatprep.subr.mxu0 0.0
    %873 = vmatpush1.msra.mxu0 0.0
    %874 = vmatprep.subr.mxu0 0.0
    %875 = vmatpush1.msra.mxu0 0.0
    %876 = vmatprep.subr.mxu0 0.0
    %877 = vmatpush1.msra.mxu0 0.0
    %878 = vmatprep.subr.mxu0 0.0
    %879 = vmatpush1.msra.mxu0 0.0
    %880 = vmatprep.subr.mxu0 0.0
    %881 = vmatpush1.msra.mxu0 0.0
    %882 = vmatprep.subr.mxu0 0.0
    %883 = vmatpush1.msra.mxu0 0.0
    %884 = vmatprep.subr.mxu0 0.0
    %885 = vmatpush1.msra.mxu0 0.0
    %886 = vmatprep.subr.mxu0 0.0
    %887 = vmatpush1.msra.mxu0 0.0
    %888 = vmatprep.subr.mxu0 0.0
    %889 = vmatpush1.msra.mxu0 0.0
    %890 = vmatprep.subr.mxu0 0.0
    %891 = vmatpush1.msra.mxu0 0.0
    %892 = vmatprep.subr.mxu0 0.0
    %893 = vmatpush1.msra.mxu0 0.0
    %894 = vmatprep.subr.mxu0 0.0
    %895 = vmatpush1.msra.mxu0 0.0
    %896 = vmatprep.subr.mxu0 0.0
    %897 = vmatpush1.msra.mxu0 0.0
    %898 = vmatprep.subr.mxu0 0.0
    %899 = vmatpush1.msra.mxu0 0.0
    %900 = vmatprep.subr.mxu0 0.0
    %901 = vmatpush1.msra.mxu0 0.0
    %902 = vmatprep.subr.mxu0 0.0
    %903 = vmatpush1.msra.mxu0 0.0
    %904 = vmatprep.subr.mxu0 0.0
    %905 = vmatpush1.msra.mxu0 0.0
    %906 = vmatprep.subr.mxu0 0.0
    %907 = vmatpush1.msra.mxu0 0.0
    %908 = vmatprep.subr.mxu0 0.0
    %909 = vmatpush1.msra.mxu0 0.0
    %910 = vmatprep.subr.mxu0 0.0
    %911 = vmatpush1.msra.mxu0 0.0
    %912 = vmatprep.subr.mxu0 0.0
    %913 = vmatpush1.msra.mxu0 0.0
    %914 = vmatprep.subr.mxu0 0.0
    %915 = vmatpush1.msra.mxu0 0.0
    %916 = vmatprep.subr.mxu0 0.0
    %917 = vmatpush1.msra.mxu0 0.0
    %918 = vmatprep.subr.mxu0 0.0
    %919 = vmatpush1.msra.mxu0 0.0
    %920 = vmatprep.subr.mxu0 0.0
    %921 = vmatpush1.msra.mxu0 0.0
    %922 = vmatprep.mubr.f32.mxu0 0.0
    %923 = vmatmul.mubr.f32.gmra.mrb[0].mxu0 %v856
    %v924 = vpop.f32.mrb[0].mxu0
    %v925 = vadd.f32 %v854, %v924
    %v926 = vpop.f32.mrb[0].mxu0
    %927 = vdwg.mxu0
    %vm928 = vcmp.ge.f32.partialorder %v925, 0.0
    %v929 = vmul.f32 %v925, 0.01
    %v930 = vsel %vm928, %v925, %v929
    %v931 = vld [vmem:[#allocation2 + $0xf8] sm:$0xff]
    %v932 = vld [vmem:[#allocation2 + $0x100] sm:$0x1]
    %v933 = vlaneseq
    %v934 = vshrl.u32 %v933, 7
    %v935 = vsub.s32 0, %v934
    %v936 = vrot.slane %v932, %v935
    %v938 = vsel %vm126, %v930, 0
    %940 = vmatprep.subr.mxu0 0.0
    %941 = vmatpush1.msra.mxu0 %v931
    %942 = vmatprep.subr.mxu0 0.0
    %943 = vmatpush1.msra.mxu0 0.0
    %944 = vmatprep.subr.mxu0 0.0
    %945 = vmatpush1.msra.mxu0 0.0
    %946 = vmatprep.subr.mxu0 0.0
    %947 = vmatpush1.msra.mxu0 0.0
    %948 = vmatprep.subr.mxu0 0.0
    %949 = vmatpush1.msra.mxu0 0.0
    %950 = vmatprep.subr.mxu0 0.0
    %951 = vmatpush1.msra.mxu0 0.0
    %952 = vmatprep.subr.mxu0 0.0
    %953 = vmatpush1.msra.mxu0 0.0
    %954 = vmatprep.subr.mxu0 0.0
    %955 = vmatpush1.msra.mxu0 0.0
    %956 = vmatprep.subr.mxu0 0.0
    %957 = vmatpush1.msra.mxu0 0.0
    %958 = vmatprep.subr.mxu0 0.0
    %959 = vmatpush1.msra.mxu0 0.0
    %960 = vmatprep.subr.mxu0 0.0
    %961 = vmatpush1.msra.mxu0 0.0
    %962 = vmatprep.subr.mxu0 0.0
    %963 = vmatpush1.msra.mxu0 0.0
    %964 = vmatprep.subr.mxu0 0.0
    %965 = vmatpush1.msra.mxu0 0.0
    %966 = vmatprep.subr.mxu0 0.0
    %967 = vmatpush1.msra.mxu0 0.0
    %968 = vmatprep.subr.mxu0 0.0
    %969 = vmatpush1.msra.mxu0 0.0
    %970 = vmatprep.subr.mxu0 0.0
    %971 = vmatpush1.msra.mxu0 0.0
    %972 = vmatprep.subr.mxu0 0.0
    %973 = vmatpush1.msra.mxu0 0.0
    %974 = vmatprep.subr.mxu0 0.0
    %975 = vmatpush1.msra.mxu0 0.0
    %976 = vmatprep.subr.mxu0 0.0
    %977 = vmatpush1.msra.mxu0 0.0
    %978 = vmatprep.subr.mxu0 0.0
    %979 = vmatpush1.msra.mxu0 0.0
    %980 = vmatprep.subr.mxu0 0.0
    %981 = vmatpush1.msra.mxu0 0.0
    %982 = vmatprep.subr.mxu0 0.0
    %983 = vmatpush1.msra.mxu0 0.0
    %984 = vmatprep.subr.mxu0 0.0
    %985 = vmatpush1.msra.mxu0 0.0
    %986 = vmatprep.subr.mxu0 0.0
    %987 = vmatpush1.msra.mxu0 0.0
    %988 = vmatprep.subr.mxu0 0.0
    %989 = vmatpush1.msra.mxu0 0.0
    %990 = vmatprep.subr.mxu0 0.0
    %991 = vmatpush1.msra.mxu0 0.0
    %992 = vmatprep.subr.mxu0 0.0
    %993 = vmatpush1.msra.mxu0 0.0
    %994 = vmatprep.subr.mxu0 0.0
    %995 = vmatpush1.msra.mxu0 0.0
    %996 = vmatprep.subr.mxu0 0.0
    %997 = vmatpush1.msra.mxu0 0.0
    %998 = vmatprep.subr.mxu0 0.0
    %999 = vmatpush1.msra.mxu0 0.0
    %1000 = vmatprep.subr.mxu0 0.0
    %1001 = vmatpush1.msra.mxu0 0.0
    %1002 = vmatprep.subr.mxu0 0.0
    %1003 = vmatpush1.msra.mxu0 0.0
    %1004 = vmatprep.mubr.f32.mxu0 0.0
    %1005 = vmatmul.mubr.f32.gmra.mrb[0].mxu0 %v938
    %v1006 = vpop.f32.mrb[0].mxu0
    %v1007 = vadd.f32 %v936, %v1006
    %v1008 = vpop.f32.mrb[0].mxu0
    %1009 = vdwg.mxu0
    %v1010 = vsub.f32 0.0, %v1007
    %v1011 = vmul.f32 %v1010, 1.442695
    %v1012 = vpow.pop %v1011
    %v1013 = vadd.f32 %v1012, 1.0
    %v1014 = vrcp.pop %v1013
    %v1015 = vmul.f32 1.0, %v1014
    %v1016 = vlaneseq
    %v1017 = vshrl.u32 %v1016, 7
    %v1018 = vsub.s32 0, %v1017
    %v1019 = vrot.slane %v1015, %v1018
    %v1020 = vlaneseq
    %v1021 = vshrl.u32 %v1020, 7
    %v1022 = vsub.s32 1, %v1021
    %v1023 = vrot.slane %v1015, %v1022
    %v1024 = vmul.f32 %v828, %v1019
    %v1025 = vmul.f32 %v829, %v1023
    %1028 = vrot.lane.b32.xlu0 %v676, 80
    %v1029 = vpop.permute.xlu0 %1028
    %1030 = vrot.lane.b32.xlu0 %v681, 80
    %v1031 = vpop.permute.xlu0 %1030
    %v1034 = vadd.f32 %v1024, %v1029
    %v1035 = vadd.f32 %v1025, %v1031
    %v1036 = vld [vmem:[#allocation2 + $0x108] sm:$0xff]
    %v1037 = vld [vmem:[#allocation2 + $0x110] sm:$0xff]
    %v1038 = vld [vmem:[#allocation2 + $0x118] sm:$0x1]
    %v1039 = vlaneseq
    %v1040 = vshrl.u32 %v1039, 7
    %v1041 = vsub.s32 0, %v1040
    %v1042 = vrot.slane %v1038, %v1041
    %v1044 = vsel %vm830, %v1034, 0
    %v1047 = vsel %vm830, %v1035, 0
    %1049 = vmatprep.subr.mxu0 0.0
    %1050 = vmatpush1.msra.mxu0 %v1036
    %1051 = vmatprep.subr.mxu0 0.0
    %1052 = vmatpush1.msra.mxu0 %v1037
    %1053 = vmatprep.subr.mxu0 0.0
    %1054 = vmatpush1.msra.mxu0 0.0
    %1055 = vmatprep.subr.mxu0 0.0
    %1056 = vmatpush1.msra.mxu0 0.0
    %1057 = vmatprep.subr.mxu0 0.0
    %1058 = vmatpush1.msra.mxu0 0.0
    %1059 = vmatprep.subr.mxu0 0.0
    %1060 = vmatpush1.msra.mxu0 0.0
    %1061 = vmatprep.subr.mxu0 0.0
    %1062 = vmatpush1.msra.mxu0 0.0
    %1063 = vmatprep.subr.mxu0 0.0
    %1064 = vmatpush1.msra.mxu0 0.0
    %1065 = vmatprep.subr.mxu0 0.0
    %1066 = vmatpush1.msra.mxu0 0.0
    %1067 = vmatprep.subr.mxu0 0.0
    %1068 = vmatpush1.msra.mxu0 0.0
    %1069 = vmatprep.subr.mxu0 0.0
    %1070 = vmatpush1.msra.mxu0 0.0
    %1071 = vmatprep.subr.mxu0 0.0
    %1072 = vmatpush1.msra.mxu0 0.0
    %1073 = vmatprep.subr.mxu0 0.0
    %1074 = vmatpush1.msra.mxu0 0.0
    %1075 = vmatprep.subr.mxu0 0.0
    %1076 = vmatpush1.msra.mxu0 0.0
    %1077 = vmatprep.subr.mxu0 0.0
    %1078 = vmatpush1.msra.mxu0 0.0
    %1079 = vmatprep.subr.mxu0 0.0
    %1080 = vmatpush1.msra.mxu0 0.0
    %1081 = vmatprep.subr.mxu0 0.0
    %1082 = vmatpush1.msra.mxu0 0.0
    %1083 = vmatprep.subr.mxu0 0.0
    %1084 = vmatpush1.msra.mxu0 0.0
    %1085 = vmatprep.subr.mxu0 0.0
    %1086 = vmatpush1.msra.mxu0 0.0
    %1087 = vmatprep.subr.mxu0 0.0
    %1088 = vmatpush1.msra.mxu0 0.0
    %1089 = vmatprep.subr.mxu0 0.0
    %1090 = vmatpush1.msra.mxu0 0.0
    %1091 = vmatprep.subr.mxu0 0.0
    %1092 = vmatpush1.msra.mxu0 0.0
    %1093 = vmatprep.subr.mxu0 0.0
    %1094 = vmatpush1.msra.mxu0 0.0
    %1095 = vmatprep.subr.mxu0 0.0
    %1096 = vmatpush1.msra.mxu0 0.0
    %1097 = vmatprep.subr.mxu0 0.0
    %1098 = vmatpush1.msra.mxu0 0.0
    %1099 = vmatprep.subr.mxu0 0.0
    %1100 = vmatpush1.msra.mxu0 0.0
    %1101 = vmatprep.subr.mxu0 0.0
    %1102 = vmatpush1.msra.mxu0 0.0
    %1103 = vmatprep.subr.mxu0 0.0
    %1104 = vmatpush1.msra.mxu0 0.0
    %1105 = vmatprep.subr.mxu0 0.0
    %1106 = vmatpush1.msra.mxu0 0.0
    %1107 = vmatprep.subr.mxu0 0.0
    %1108 = vmatpush1.msra.mxu0 0.0
    %1109 = vmatprep.subr.mxu0 0.0
    %1110 = vmatpush1.msra.mxu0 0.0
    %1111 = vmatprep.subr.mxu0 0.0
    %1112 = vmatpush1.msra.mxu0 0.0
    %1113 = vmatprep.mubr.f32.mxu0 0.0
    %1114 = vmatmul.mubr.f32.gmra.mrb[0].mxu0 %v1044
    %v1115 = vpop.f32.mrb[0].mxu0
    %v1116 = vadd.f32 %v1042, %v1115
    %v1117 = vpop.f32.mrb[0].mxu0
    %1118 = vmatprep.mubr.f32.mxu0 0.0
    %1119 = vmatmul.mubr.f32.gmra.mrb[0].mxu0 %v1047
    %v1120 = vpop.f32.mrb[0].mxu0
    %v1121 = vadd.f32 %v1042, %v1120
    %v1122 = vpop.f32.mrb[0].mxu0
    %1123 = vdwg.mxu0
    %1124 = vst.msk [vmem:[#allocation5] sm:$0xff] %vm830, %v1116
    %1125 = vst.msk [vmem:[#allocation5 + $0x8] sm:$0xff] %vm830, %v1121
    // Predicated region
    $region14: #{tpu_custom_call.1} parent=1 // pred_check
      _
    $region15: #{tpu_custom_call.1} parent=1 // pred_check_branch
      %1127 = sbr.rel (0) target = $region17
    $region16: #{tpu_custom_call.1} parent=1 // pred_region
      %s1129 = ssub.s32 256, 256
      %1130 = vsyncadd [#allocation4], %s1129
      %s1131 = sshll.u32 [#allocation5], 4
      %s1132 = int_to_ptr.vmem [resolvable:$true] %s1131
      %1137 = dma.vmem_to_hbm [thread:$0]  %s1132, 256, %s2, [#allocation4], 128, 128, 8
    $region17: #{tpu_custom_call.1} parent=1 // pred_fallthru
      _
    // Predicated region
    $region18: #{tpu_custom_call.1} parent=1 // pred_check
      _
    $region19: #{tpu_custom_call.1} parent=1 // pred_check_branch
      %1139 = sbr.rel (0) target = $region21
    $region20: #{tpu_custom_call.1} parent=1 // pred_region
      %1140 = dma.done [#allocation4], 256
    $region21: #{tpu_custom_call.1} parent=1 // pred_fallthru
      _
    %1141 = vsyncpa [#allocation3], 1
    %1142 = vsyncpa [#allocation4], 1

</llo_original>
